<compile_context>
chip_gen: v6e
topology: v6e:2x2x1
jax: 0.10.0
libtpu: 0.0.40
codegen_flags: <defaults>
</compile_context>

<pallas_src>
import functools

import jax
import jax.numpy as jnp
from jax.experimental import pallas as pl
from jax.experimental.pallas import tpu as pltpu

BN_EPS = 1e-5


def _round_up(x, m):
    return (x + m - 1) // m * m


# --------------------------------------------------------------------------
# Pass 1: accumulate per-feature sum and sum-of-squares of h = (hu*hv) @ W1 + b1
# --------------------------------------------------------------------------
def _bn_stats_kernel(hu_ref, hv_ref, w1_ref, b1_ref, sum_ref, sumsq_ref, *,
                     num_edges, tile_e):
    i = pl.program_id(0)

    @pl.when(i == 0)
    def _():
        sum_ref[...] = jnp.zeros_like(sum_ref)
        sumsq_ref[...] = jnp.zeros_like(sumsq_ref)

    x = hu_ref[...].astype(jnp.float32) * hv_ref[...].astype(jnp.float32)
    h = jnp.dot(x, w1_ref[...].astype(jnp.float32),
                preferred_element_type=jnp.float32) + b1_ref[...].astype(jnp.float32)

    # Mask padded rows of the ragged last tile out of the BN statistics.
    rows = i * tile_e + jax.lax.broadcasted_iota(jnp.int32, (tile_e, 1), 0)
    valid = rows < num_edges
    h = jnp.where(valid, h, 0.0)

    sum_ref[...] += jnp.sum(h, axis=0, keepdims=True)
    sumsq_ref[...] += jnp.sum(h * h, axis=0, keepdims=True)


# --------------------------------------------------------------------------
# Pass 2: out = ReLU(x @ W1_folded + b1_folded) @ W2 + b2   (BN already folded)
# --------------------------------------------------------------------------
def _mlp_apply_kernel(hu_ref, hv_ref, w1_ref, b1_ref, w2_ref, b2_ref, out_ref):
    x = hu_ref[...].astype(jnp.float32) * hv_ref[...].astype(jnp.float32)
    h = jnp.dot(x, w1_ref[...], preferred_element_type=jnp.float32) + b1_ref[...]
    h = jnp.maximum(h, 0.0)
    out_ref[...] = (jnp.dot(h, w2_ref[...], preferred_element_type=jnp.float32)
                    + b2_ref[...]).astype(out_ref.dtype)


@functools.partial(jax.jit, static_argnames=("tile_e",))
def mlp_predictor_pallas(h_u, h_v, w1, b1, gamma, beta, w2, b2, *, tile_e=4096):
    """h_u, h_v: [E, F] per-edge gathered features. Returns [E, C] scores."""
    E, F = h_u.shape
    H = w1.shape[1]
    C = w2.shape[1]
    in_bytes = h_u.dtype.itemsize

    # Edge tile: multiple of 8 sublanes; last tile may be ragged (handled).
    tile_e = min(tile_e, _round_up(E, 8))
    num_tiles = pl.cdiv(E, tile_e)

    edge_spec = pl.BlockSpec((tile_e, F), lambda i: (i, 0))
    w1_spec = pl.BlockSpec((F, H), lambda i: (0, 0))
    vecH_spec = pl.BlockSpec((1, H), lambda i: (0, 0))
    w2_spec = pl.BlockSpec((H, C), lambda i: (0, 0))
    vecC_spec = pl.BlockSpec((1, C), lambda i: (0, 0))

    # ---- Pass 1: global BN statistics (sequential accumulation over tiles) ----
    sum_h, sumsq_h = pl.pallas_call(
        functools.partial(_bn_stats_kernel, num_edges=E, tile_e=tile_e),
        out_shape=(jax.ShapeDtypeStruct((1, H), jnp.float32),
                   jax.ShapeDtypeStruct((1, H), jnp.float32)),
        grid=(num_tiles,),
        in_specs=[edge_spec, edge_spec, w1_spec, vecH_spec],
        out_specs=(vecH_spec, vecH_spec),
        compiler_params=pltpu.CompilerParams(
            dimension_semantics=("arbitrary",)),
        cost_estimate=pl.CostEstimate(
            flops=int(2 * E * F * H + 4 * E * H),
            transcendentals=0,
            bytes_accessed=int(E * 2 * F * in_bytes + (F * H + 3 * H) * 4)),
    )(h_u, h_v, w1, b1)

    # ---- Fold BN (training-mode batch stats) into W1 / b1 (tiny, XLA side) ----
    mean = sum_h / E
    var = jnp.maximum(sumsq_h / E - mean * mean, 0.0)   # biased variance
    scale = gamma * jax.lax.rsqrt(var + BN_EPS)          # [1, H]
    w1_folded = w1 * scale                               # [F, H]
    b1_folded = (b1 - mean) * scale + beta               # [1, H]

    # ---- Pass 2: fused apply (E tiles are independent -> "parallel") ----------
    score = pl.pallas_call(
        _mlp_apply_kernel,
        out_shape=jax.ShapeDtypeStruct((E, C), jnp.float32),
        grid=(num_tiles,),
        in_specs=[edge_spec, edge_spec, w1_spec, vecH_spec, w2_spec, vecC_spec],
        out_specs=pl.BlockSpec((tile_e, C), lambda i: (i, 0)),
        compiler_params=pltpu.CompilerParams(
            dimension_semantics=("parallel",)),
        cost_estimate=pl.CostEstimate(
            flops=int(2 * E * (F * H + H * C) + 2 * E * H),
            transcendentals=0,
            bytes_accessed=int(E * (2 * F * in_bytes + C * 4)
                               + (F * H + H * C + H + C) * 4)),
    )(h_u, h_v, w1_folded, b1_folded, w2, b2)
    return score


def _reference(h_u, h_v, w1, b1, gamma, beta, w2, b2):
    x = h_u.astype(jnp.float32) * h_v.astype(jnp.float32)
    h = x @ w1 + b1
    mean = jnp.mean(h, axis=0, keepdims=True)
    var = jnp.mean((h - mean) ** 2, axis=0, keepdims=True)
    h = (h - mean) / jnp.sqrt(var + BN_EPS) * gamma + beta
    h = jnp.maximum(h, 0.0)
    return h @ w2 + b2


if __name__ == "__main__":
    # Small synthetic "graph": bipartite user->user edges.
    in_features, hidden_dim, out_classes = 16, 32, 4
    num_src_nodes, num_dst_nodes, num_edges = 40, 37, 200
    tile_e = 64   # small tile so the demo exercises the grid + ragged last tile

    key = jax.random.PRNGKey(0)
    keys = jax.random.split(key, 10)

    # Node features (the 'user' ndata in the DGL graph).
    h_src_nodes = jax.random.normal(keys[0], (num_src_nodes, in_features), jnp.float32)
    h_dst_nodes = jax.random.normal(keys[1], (num_dst_nodes, in_features), jnp.float32)

    # Edge list (graph structure).
    edge_src = jax.random.randint(keys[2], (num_edges,), 0, num_src_nodes)
    edge_dst = jax.random.randint(keys[3], (num_edges,), 0, num_dst_nodes)

    # Parameters (shapes from the module's __init__), weights stored [in, out].
    w1 = jax.random.normal(keys[4], (in_features, hidden_dim), jnp.float32) * 0.1
    b1 = jax.random.normal(keys[5], (1, hidden_dim), jnp.float32) * 0.1
    gamma = 1.0 + 0.1 * jax.random.normal(keys[6], (1, hidden_dim), jnp.float32)
    beta = 0.1 * jax.random.normal(keys[7], (1, hidden_dim), jnp.float32)
    w2 = jax.random.normal(keys[8], (hidden_dim, out_classes), jnp.float32) * 0.1
    b2 = jax.random.normal(keys[9], (1, out_classes), jnp.float32) * 0.1

    # Graph gather (apply_edges: edges.src['h_src'], edges.dst['h_dst']) — glue.
    h_u = h_src_nodes[edge_src]   # [E, in_features]
    h_v = h_dst_nodes[edge_dst]   # [E, in_features]

    score = mlp_predictor_pallas(h_u, h_v, w1, b1, gamma, beta, w2, b2,
                                 tile_e=tile_e)
    score = jax.block_until_ready(score)

    ref = _reference(h_u, h_v, w1, b1, gamma, beta, w2, b2)
    assert score.shape == (num_edges, out_classes)
    assert jnp.allclose(score, ref, atol=1e-4, rtol=1e-4), \
        float(jnp.max(jnp.abs(score - ref)))

    print("KERNEL_OK")
</pallas_src>

<mosaic_0001>
module attributes {stable_mosaic.version = 11 : i64} {
  func.func @_bn_stats_kernel(%arg0: i32, %arg1: memref<64x16xf32, #tpu.memory_space<vmem>>, %arg2: memref<64x16xf32, #tpu.memory_space<vmem>>, %arg3: memref<16x32xf32, #tpu.memory_space<vmem>>, %arg4: memref<1x32xf32, #tpu.memory_space<vmem>>, %arg5: memref<1x32xf32, #tpu.memory_space<vmem>>, %arg6: memref<1x32xf32, #tpu.memory_space<vmem>>) attributes {dimension_semantics = [#tpu.dimension_semantics<arbitrary>], iteration_bounds = array<i64: 4>, scalar_prefetch = 0 : i64, scratch_operands = 0 : i64, tpu.core_type = #tpu.core_type<tc>, window_params = [{transform_indices = @transform_0, window_bounds = array<i64: 64, 16>}, {transform_indices = @transform_1, window_bounds = array<i64: 64, 16>}, {pipeline_mode = #tpu.pipeline_mode<synchronous>, transform_indices = @transform_2, window_bounds = array<i64: 16, 32>}, {pipeline_mode = #tpu.pipeline_mode<synchronous>, transform_indices = @transform_3, window_bounds = array<i64: 1, 32>}, {pipeline_mode = #tpu.pipeline_mode<synchronous>, transform_indices = @transform_4, window_bounds = array<i64: 1, 32>}, {pipeline_mode = #tpu.pipeline_mode<synchronous>, transform_indices = @transform_5, window_bounds = array<i64: 1, 32>}]} {
    %c0_i32 = arith.constant 0 : i32
    %0 = arith.cmpi eq, %arg0, %c0_i32 : i32
    %1 = arith.extui %0 : i1 to i32
    %c0_i32_0 = arith.constant 0 : i32
    %2 = arith.cmpi ne, %1, %c0_i32_0 : i32
    scf.if %2 {
      %cst_19 = arith.constant 0.000000e+00 : f32
      %32 = vector.broadcast %cst_19 : f32 to vector<1x32xf32>
      %c0_20 = arith.constant 0 : index
      %c0_21 = arith.constant 0 : index
      %33 = vector.load %arg5[%c0_20, %c0_21] : memref<1x32xf32, #tpu.memory_space<vmem>>, vector<1x32xf32>
      tpu.vector_store %arg5[%c0_20, %c0_21], %32 {strides = array<i32>} : memref<1x32xf32, #tpu.memory_space<vmem>>, vector<1x32xf32>,
      %cst_22 = arith.constant 0.000000e+00 : f32
      %34 = vector.broadcast %cst_22 : f32 to vector<1x32xf32>
      %c0_23 = arith.constant 0 : index
      %c0_24 = arith.constant 0 : index
      %35 = vector.load %arg6[%c0_23, %c0_24] : memref<1x32xf32, #tpu.memory_space<vmem>>, vector<1x32xf32>
      tpu.vector_store %arg6[%c0_23, %c0_24], %34 {strides = array<i32>} : memref<1x32xf32, #tpu.memory_space<vmem>>, vector<1x32xf32>,
    } else {
    }
    %c0 = arith.constant 0 : index
    %c0_1 = arith.constant 0 : index
    %3 = vector.load %arg1[%c0, %c0_1] : memref<64x16xf32, #tpu.memory_space<vmem>>, vector<64x16xf32>
    %c0_2 = arith.constant 0 : index
    %c0_3 = arith.constant 0 : index
    %4 = vector.load %arg2[%c0_2, %c0_3] : memref<64x16xf32, #tpu.memory_space<vmem>>, vector<64x16xf32>
    %5 = arith.mulf %3, %4 : vector<64x16xf32>
    %c0_4 = arith.constant 0 : index
    %c0_5 = arith.constant 0 : index
    %6 = vector.load %arg3[%c0_4, %c0_5] : memref<16x32xf32, #tpu.memory_space<vmem>>, vector<16x32xf32>
    %cst = arith.constant dense<0.000000e+00> : vector<64x32xf32>
    %7 = tpu.matmul %5, %6, %cst {dimension_numbers = #tpu.dot_dimension_numbers<[1], [0], [0], [1], [0, 0, 1, 1], [], []>} : vector<64x16xf32>, vector<16x32xf32>, vector<64x32xf32> -> vector<64x32xf32>
    %c0_6 = arith.constant 0 : index
    %c0_7 = arith.constant 0 : index
    %8 = vector.load %arg4[%c0_6, %c0_7] : memref<1x32xf32, #tpu.memory_space<vmem>>, vector<1x32xf32>
    %9 = vector.broadcast %8 : vector<1x32xf32> to vector<64x32xf32>
    %10 = arith.addf %7, %9 : vector<64x32xf32>
    %c64_i32 = arith.constant 64 : i32
    %11 = arith.muli %arg0, %c64_i32 : i32
    %12 = tpu.iota {dimensions = array<i32: 0>} : vector<64x1xi32>
    %13 = vector.broadcast %11 : i32 to vector<64x1xi32>
    %14 = arith.addi %13, %12 : vector<64x1xi32>
    %c200_i32 = arith.constant 200 : i32
    %15 = vector.broadcast %c200_i32 : i32 to vector<64x1xi32>
    %16 = arith.cmpi slt, %14, %15 : vector<64x1xi32>
    %cst_8 = arith.constant 0.000000e+00 : f32
    %17 = vector.shape_cast %16 : vector<64x1xi1> to vector<64x1xi1>
    %18 = vector.broadcast %17 : vector<64x1xi1> to vector<64x32xi1>
    %19 = vector.broadcast %cst_8 : f32 to vector<64x32xf32>
    %20 = arith.select %18, %10, %19 : vector<64x32xi1>, vector<64x32xf32>
    %c0_9 = arith.constant 0 : index
    %c0_10 = arith.constant 0 : index
    %21 = vector.load %arg5[%c0_9, %c0_10] : memref<1x32xf32, #tpu.memory_space<vmem>>, vector<1x32xf32>
    %cst_11 = arith.constant dense<0.000000e+00> : vector<32xf32>
    %22 = vector.multi_reduction <add>, %20, %cst_11 [0] : vector<64x32xf32> to vector<32xf32>
    %23 = vector.shape_cast %22 : vector<32xf32> to vector<1x32xf32>
    %24 = arith.addf %21, %23 : vector<1x32xf32>
    %c0_12 = arith.constant 0 : index
    %c0_13 = arith.constant 0 : index
    %25 = vector.load %arg5[%c0_12, %c0_13] : memref<1x32xf32, #tpu.memory_space<vmem>>, vector<1x32xf32>
    tpu.vector_store %arg5[%c0_12, %c0_13], %24 {strides = array<i32>} : memref<1x32xf32, #tpu.memory_space<vmem>>, vector<1x32xf32>,
    %c0_14 = arith.constant 0 : index
    %c0_15 = arith.constant 0 : index
    %26 = vector.load %arg6[%c0_14, %c0_15] : memref<1x32xf32, #tpu.memory_space<vmem>>, vector<1x32xf32>
    %27 = arith.mulf %20, %20 : vector<64x32xf32>
    %cst_16 = arith.constant dense<0.000000e+00> : vector<32xf32>
    %28 = vector.multi_reduction <add>, %27, %cst_16 [0] : vector<64x32xf32> to vector<32xf32>
    %29 = vector.shape_cast %28 : vector<32xf32> to vector<1x32xf32>
    %30 = arith.addf %26, %29 : vector<1x32xf32>
    %c0_17 = arith.constant 0 : index
    %c0_18 = arith.constant 0 : index
    %31 = vector.load %arg6[%c0_17, %c0_18] : memref<1x32xf32, #tpu.memory_space<vmem>>, vector<1x32xf32>
    tpu.vector_store %arg6[%c0_17, %c0_18], %30 {strides = array<i32>} : memref<1x32xf32, #tpu.memory_space<vmem>>, vector<1x32xf32>,
    return
  }
  func.func @transform_0(%arg0: i32) -> (i32, i32) {
    %c0_i32 = arith.constant 0 : i32
    %c0_i32_0 = arith.constant 0 : i32
    return %arg0, %c0_i32 : i32, i32
  }
  func.func @transform_1(%arg0: i32) -> (i32, i32) {
    %c0_i32 = arith.constant 0 : i32
    %c0_i32_0 = arith.constant 0 : i32
    return %arg0, %c0_i32 : i32, i32
  }
  func.func @transform_2(%arg0: i32) -> (i32, i32) {
    %c0_i32 = arith.constant 0 : i32
    %c0_i32_0 = arith.constant 0 : i32
    %c0_i32_1 = arith.constant 0 : i32
    return %c0_i32, %c0_i32_0 : i32, i32
  }
  func.func @transform_3(%arg0: i32) -> (i32, i32) {
    %c0_i32 = arith.constant 0 : i32
    %c0_i32_0 = arith.constant 0 : i32
    %c0_i32_1 = arith.constant 0 : i32
    return %c0_i32, %c0_i32_0 : i32, i32
  }
  func.func @transform_4(%arg0: i32) -> (i32, i32) {
    %c0_i32 = arith.constant 0 : i32
    %c0_i32_0 = arith.constant 0 : i32
    %c0_i32_1 = arith.constant 0 : i32
    return %c0_i32, %c0_i32_0 : i32, i32
  }
  func.func @transform_5(%arg0: i32) -> (i32, i32) {
    %c0_i32 = arith.constant 0 : i32
    %c0_i32_0 = arith.constant 0 : i32
    %c0_i32_1 = arith.constant 0 : i32
    return %c0_i32, %c0_i32_0 : i32, i32
  }
}

module attributes {stable_mosaic.version = 11 : i64} {
  func.func @_mlp_apply_kernel(%arg0: i32, %arg1: memref<64x16xf32, #tpu.memory_space<vmem>>, %arg2: memref<64x16xf32, #tpu.memory_space<vmem>>, %arg3: memref<16x32xf32, #tpu.memory_space<vmem>>, %arg4: memref<1x32xf32, #tpu.memory_space<vmem>>, %arg5: memref<32x4xf32, #tpu.memory_space<vmem>>, %arg6: memref<1x4xf32, #tpu.memory_space<vmem>>, %arg7: memref<64x4xf32, #tpu.memory_space<vmem>>) attributes {dimension_semantics = [#tpu.dimension_semantics<parallel>], iteration_bounds = array<i64: 4>, scalar_prefetch = 0 : i64, scratch_operands = 0 : i64, tpu.core_type = #tpu.core_type<tc>, window_params = [{transform_indices = @transform_0, window_bounds = array<i64: 64, 16>}, {transform_indices = @transform_1, window_bounds = array<i64: 64, 16>}, {pipeline_mode = #tpu.pipeline_mode<synchronous>, transform_indices = @transform_2, window_bounds = array<i64: 16, 32>}, {pipeline_mode = #tpu.pipeline_mode<synchronous>, transform_indices = @transform_3, window_bounds = array<i64: 1, 32>}, {pipeline_mode = #tpu.pipeline_mode<synchronous>, transform_indices = @transform_4, window_bounds = array<i64: 32, 4>}, {pipeline_mode = #tpu.pipeline_mode<synchronous>, transform_indices = @transform_5, window_bounds = array<i64: 1, 4>}, {transform_indices = @transform_6, window_bounds = array<i64: 64, 4>}]} {
    %c0 = arith.constant 0 : index
    %c0_0 = arith.constant 0 : index
    %0 = vector.load %arg1[%c0, %c0_0] : memref<64x16xf32, #tpu.memory_space<vmem>>, vector<64x16xf32>
    %c0_1 = arith.constant 0 : index
    %c0_2 = arith.constant 0 : index
    %1 = vector.load %arg2[%c0_1, %c0_2] : memref<64x16xf32, #tpu.memory_space<vmem>>, vector<64x16xf32>
    %2 = arith.mulf %0, %1 : vector<64x16xf32>
    %c0_3 = arith.constant 0 : index
    %c0_4 = arith.constant 0 : index
    %3 = vector.load %arg3[%c0_3, %c0_4] : memref<16x32xf32, #tpu.memory_space<vmem>>, vector<16x32xf32>
    %cst = arith.constant dense<0.000000e+00> : vector<64x32xf32>
    %4 = tpu.matmul %2, %3, %cst {dimension_numbers = #tpu.dot_dimension_numbers<[1], [0], [0], [1], [0, 0, 1, 1], [], []>} : vector<64x16xf32>, vector<16x32xf32>, vector<64x32xf32> -> vector<64x32xf32>
    %c0_5 = arith.constant 0 : index
    %c0_6 = arith.constant 0 : index
    %5 = vector.load %arg4[%c0_5, %c0_6] : memref<1x32xf32, #tpu.memory_space<vmem>>, vector<1x32xf32>
    %6 = vector.broadcast %5 : vector<1x32xf32> to vector<64x32xf32>
    %7 = arith.addf %4, %6 : vector<64x32xf32>
    %cst_7 = arith.constant 0.000000e+00 : f32
    %8 = vector.broadcast %cst_7 : f32 to vector<64x32xf32>
    %9 = arith.maximumf %7, %8 : vector<64x32xf32>
    %c0_8 = arith.constant 0 : index
    %c0_9 = arith.constant 0 : index
    %10 = vector.load %arg5[%c0_8, %c0_9] : memref<32x4xf32, #tpu.memory_space<vmem>>, vector<32x4xf32>
    %cst_10 = arith.constant dense<0.000000e+00> : vector<64x4xf32>
    %11 = tpu.matmul %9, %10, %cst_10 {dimension_numbers = #tpu.dot_dimension_numbers<[1], [0], [0], [1], [0, 0, 1, 1], [], []>} : vector<64x32xf32>, vector<32x4xf32>, vector<64x4xf32> -> vector<64x4xf32>
    %c0_11 = arith.constant 0 : index
    %c0_12 = arith.constant 0 : index
    %12 = vector.load %arg6[%c0_11, %c0_12] : memref<1x4xf32, #tpu.memory_space<vmem>>, vector<1x4xf32>
    %13 = vector.broadcast %12 : vector<1x4xf32> to vector<64x4xf32>
    %14 = arith.addf %11, %13 : vector<64x4xf32>
    %c0_13 = arith.constant 0 : index
    %c0_14 = arith.constant 0 : index
    %15 = vector.load %arg7[%c0_13, %c0_14] : memref<64x4xf32, #tpu.memory_space<vmem>>, vector<64x4xf32>
    tpu.vector_store %arg7[%c0_13, %c0_14], %14 {strides = array<i32>} : memref<64x4xf32, #tpu.memory_space<vmem>>, vector<64x4xf32>,
    return
  }
  func.func @transform_0(%arg0: i32) -> (i32, i32) {
    %c0_i32 = arith.constant 0 : i32
    %c0_i32_0 = arith.constant 0 : i32
    return %arg0, %c0_i32 : i32, i32
  }
  func.func @transform_1(%arg0: i32) -> (i32, i32) {
    %c0_i32 = arith.constant 0 : i32
    %c0_i32_0 = arith.constant 0 : i32
    return %arg0, %c0_i32 : i32, i32
  }
  func.func @transform_2(%arg0: i32) -> (i32, i32) {
    %c0_i32 = arith.constant 0 : i32
    %c0_i32_0 = arith.constant 0 : i32
    %c0_i32_1 = arith.constant 0 : i32
    return %c0_i32, %c0_i32_0 : i32, i32
  }
  func.func @transform_3(%arg0: i32) -> (i32, i32) {
    %c0_i32 = arith.constant 0 : i32
    %c0_i32_0 = arith.constant 0 : i32
    %c0_i32_1 = arith.constant 0 : i32
    return %c0_i32, %c0_i32_0 : i32, i32
  }
  func.func @transform_4(%arg0: i32) -> (i32, i32) {
    %c0_i32 = arith.constant 0 : i32
    %c0_i32_0 = arith.constant 0 : i32
    %c0_i32_1 = arith.constant 0 : i32
    return %c0_i32, %c0_i32_0 : i32, i32
  }
  func.func @transform_5(%arg0: i32) -> (i32, i32) {
    %c0_i32 = arith.constant 0 : i32
    %c0_i32_0 = arith.constant 0 : i32
    %c0_i32_1 = arith.constant 0 : i32
    return %c0_i32, %c0_i32_0 : i32, i32
  }
  func.func @transform_6(%arg0: i32) -> (i32, i32) {
    %c0_i32 = arith.constant 0 : i32
    %c0_i32_0 = arith.constant 0 : i32
    return %arg0, %c0_i32 : i32, i32
  }
}

</mosaic_0001>

<llo_original>
// kernel: mlp_predictor_pallas.2
$region0: #{mlp_predictor_pallas.2}
  #allocation0 [shape = 'u32[]', space=smem, size = 0x4, offset = 0x4, fixed_abs, tag = 'smem constant byte address 0x4 - core index']
  #allocation1 [shape = 'u32[144,128]{1,0:T(1,128)}', space=vmem, size = 0x12000, scoped, tag = 'internal scratch']
  %s0 = inlined_call_operand.vmem [shape: f32[200,16], index: 0, kind: input, shape index: {}]
  %s1 = inlined_call_operand.vmem [shape: f32[200,16], index: 1, kind: input, shape index: {}]
  %s2 = inlined_call_operand.vmem [shape: f32[16,32], index: 2, kind: input, shape index: {}]
  %s3 = inlined_call_operand.vmem [shape: f32[1,32], index: 3, kind: input, shape index: {}]
  %s4 = inlined_call_operand.vmem [shape: f32[1,32], index: 4, kind: output, shape index: {0}]
  %s5 = inlined_call_operand.vmem [shape: f32[1,32], index: 5, kind: output, shape index: {1}]
  %6 = xla_tuple %s4, %s5
  %s7 = sld [smem:[#allocation0]]
  $region61: #{mlp_predictor_pallas.2} parent=0
    _
  %s9 = ssub.s32 1, %s7
  %s10 = scalar_select 0, %s9, %s7
  loop: start=0, step=1, limit=6
  $region2: #{mlp_predictor_pallas.2} parent=0 // loop_pre_header
    _
  $region3: #{mlp_predictor_pallas.2} parent=0 // loop_header
    %s12 = sphi 0, %s16
    %p13 = scmp.ge.s32.totalorder %s12, 6
    %s22 = sphi 0, %s24
    %s25 = sphi 0, %s22
    %s26 = sphi 0, %s25
    %s42 = sphi 0, %s26
    %s48 = sphi 0, %s50
    %s51 = sphi 0, %s48
    %s52 = sphi 0, %s51
    %s68 = sphi 0, %s52
    %s72 = sphi 0, %s72
    %s74 = sphi 0, %s72
    %s75 = sphi 0, %s74
    %s89 = sphi 0, %s75
    %s93 = sphi 0, %s93
    %s95 = sphi 0, %s93
    %s96 = sphi 0, %s95
    %s110 = sphi 0, %s96
    %s114 = sphi 0, %s114
    %s116 = sphi 0, %s114
    %s117 = sphi 0, %s116
    %s131 = sphi 0, %s117
    %s135 = sphi 0, %s135
    %s137 = sphi 0, %s135
    %s138 = sphi 0, %s137
    %s152 = sphi 0, %s138
  $region4: #{mlp_predictor_pallas.2} parent=0 // loop_header_branch
    %15 = sbr.rel (%p13) target = $region8
  $region5: #{mlp_predictor_pallas.2} parent=0 // loop_body
    %s17 = ssub.s32 %s12, 1
    %s18 = ssub.s32 %s12, 2
    %s19 = sadd.s32 %s12, 1
    %s20 = ssub.s32 %s12, %s19
    %p21 = scmp.eq.s32.totalorder %s20, 0
    %s23 = sadd.s32 %s22, 1
    %s24 = scalar_select %p21, %s22, %s23
    %p27 = pneg %p21
    %p28 = scmp.eq.s32.totalorder %s12, 3
    %p29 = por %p27, %p28
    %p30 = scmp.ne.s32.totalorder %s22, %s25
    %p31 = scmp.eq.s32.totalorder %s12, 0
    %p32 = por %p30, %p31
    %p33 = scmp.ne.s32.totalorder %s22, %s25
    %p34 = scmp.eq.s32.totalorder %s17, 3
    %p35 = por %p33, %p34
    %p36 = scmp.ne.s32.totalorder %s25, %s26
    %p37 = scmp.eq.s32.totalorder %s17, 0
    %p38 = por %p36, %p37
    %p39 = scmp.ne.s32.totalorder %s25, %s26
    %p40 = scmp.eq.s32.totalorder %s18, 3
    %p41 = por %p39, %p40
    %p43 = scmp.ne.s32.totalorder %s26, %s42
    %p44 = scmp.eq.s32.totalorder %s18, 0
    %p45 = por %p43, %p44
    %s46 = ssub.s32 %s12, %s19
    %p47 = scmp.eq.s32.totalorder %s46, 0
    %s49 = sadd.s32 %s48, 1
    %s50 = scalar_select %p47, %s48, %s49
    %p53 = pneg %p47
    %p54 = scmp.eq.s32.totalorder %s12, 3
    %p55 = por %p53, %p54
    %p56 = scmp.ne.s32.totalorder %s48, %s51
    %p57 = scmp.eq.s32.totalorder %s12, 0
    %p58 = por %p56, %p57
    %p59 = scmp.ne.s32.totalorder %s48, %s51
    %p60 = scmp.eq.s32.totalorder %s17, 3
    %p61 = por %p59, %p60
    %p62 = scmp.ne.s32.totalorder %s51, %s52
    %p63 = scmp.eq.s32.totalorder %s17, 0
    %p64 = por %p62, %p63
    %p65 = scmp.ne.s32.totalorder %s51, %s52
    %p66 = scmp.eq.s32.totalorder %s18, 3
    %p67 = por %p65, %p66
    %p69 = scmp.ne.s32.totalorder %s52, %s68
    %p70 = scmp.eq.s32.totalorder %s18, 0
    %p71 = por %p69, %p70
    %s73 = sadd.s32 %s72, 1
    %p76 = scmp.eq.s32.totalorder %s12, 3
    %p77 = scmp.ne.s32.totalorder %s72, %s74
    %p78 = scmp.eq.s32.totalorder %s12, 0
    %p79 = por %p77, %p78
    %p80 = scmp.ne.s32.totalorder %s72, %s74
    %p81 = scmp.eq.s32.totalorder %s17, 3
    %p82 = por %p80, %p81
    %p83 = scmp.ne.s32.totalorder %s74, %s75
    %p84 = scmp.eq.s32.totalorder %s17, 0
    %p85 = por %p83, %p84
    %p86 = scmp.ne.s32.totalorder %s74, %s75
    %p87 = scmp.eq.s32.totalorder %s18, 3
    %p88 = por %p86, %p87
    %p90 = scmp.ne.s32.totalorder %s75, %s89
    %p91 = scmp.eq.s32.totalorder %s18, 0
    %p92 = por %p90, %p91
    %s94 = sadd.s32 %s93, 1
    %p97 = scmp.eq.s32.totalorder %s12, 3
    %p98 = scmp.ne.s32.totalorder %s93, %s95
    %p99 = scmp.eq.s32.totalorder %s12, 0
    %p100 = por %p98, %p99
    %p101 = scmp.ne.s32.totalorder %s93, %s95
    %p102 = scmp.eq.s32.totalorder %s17, 3
    %p103 = por %p101, %p102
    %p104 = scmp.ne.s32.totalorder %s95, %s96
    %p105 = scmp.eq.s32.totalorder %s17, 0
    %p106 = por %p104, %p105
    %p107 = scmp.ne.s32.totalorder %s95, %s96
    %p108 = scmp.eq.s32.totalorder %s18, 3
    %p109 = por %p107, %p108
    %p111 = scmp.ne.s32.totalorder %s96, %s110
    %p112 = scmp.eq.s32.totalorder %s18, 0
    %p113 = por %p111, %p112
    %s115 = sadd.s32 %s114, 1
    %p118 = scmp.eq.s32.totalorder %s12, 3
    %p119 = scmp.ne.s32.totalorder %s114, %s116
    %p120 = scmp.eq.s32.totalorder %s12, 0
    %p121 = por %p119, %p120
    %p122 = scmp.ne.s32.totalorder %s114, %s116
    %p123 = scmp.eq.s32.totalorder %s17, 3
    %p124 = por %p122, %p123
    %p125 = scmp.ne.s32.totalorder %s116, %s117
    %p126 = scmp.eq.s32.totalorder %s17, 0
    %p127 = por %p125, %p126
    %p128 = scmp.ne.s32.totalorder %s116, %s117
    %p129 = scmp.eq.s32.totalorder %s18, 3
    %p130 = por %p128, %p129
    %p132 = scmp.ne.s32.totalorder %s117, %s131
    %p133 = scmp.eq.s32.totalorder %s18, 0
    %p134 = por %p132, %p133
    %s136 = sadd.s32 %s135, 1
    %p139 = scmp.eq.s32.totalorder %s12, 3
    %p140 = scmp.ne.s32.totalorder %s135, %s137
    %p141 = scmp.eq.s32.totalorder %s12, 0
    %p142 = por %p140, %p141
    %p143 = scmp.ne.s32.totalorder %s135, %s137
    %p144 = scmp.eq.s32.totalorder %s17, 3
    %p145 = por %p143, %p144
    %p146 = scmp.ne.s32.totalorder %s137, %s138
    %p147 = scmp.eq.s32.totalorder %s17, 0
    %p148 = por %p146, %p147
    %p149 = scmp.ne.s32.totalorder %s137, %s138
    %p150 = scmp.eq.s32.totalorder %s18, 3
    %p151 = por %p149, %p150
    %p153 = scmp.ne.s32.totalorder %s138, %s152
    %p154 = scmp.eq.s32.totalorder %s18, 0
    %p155 = por %p153, %p154
    %p156 = scmp.le.s32.totalorder 1, %s12
    %p157 = scmp.lt.s32.totalorder %s12, 5
    %p158 = pnand %p156, %p157
    %p159 = pneg %p158
    // Predicated region
    $region9: #{mlp_predictor_pallas.2} parent=5 // pred_check
      _
    $region10: #{mlp_predictor_pallas.2} parent=5 // pred_check_branch
      %161 = sbr.rel (%p158) target = $region12
    $region11: #{mlp_predictor_pallas.2} parent=5 // pred_region
      %s162 = ssub.s32 %s12, 1
      // Predicated region
      $region13: #{mlp_predictor_pallas.2} parent=11 // pred_check
        %p163 = pneg %p85
      $region14: #{mlp_predictor_pallas.2} parent=11 // pred_check_branch
        %165 = sbr.rel (%p163) target = $region16
      $region15: #{mlp_predictor_pallas.2} parent=11 // pred_region
        _
      $region16: #{mlp_predictor_pallas.2} parent=11 // pred_fallthru
        _
      // Predicated region
      $region17: #{mlp_predictor_pallas.2} parent=11 // pred_check
        %p166 = pneg %p106
      $region18: #{mlp_predictor_pallas.2} parent=11 // pred_check_branch
        %168 = sbr.rel (%p166) target = $region20
      $region19: #{mlp_predictor_pallas.2} parent=11 // pred_region
        _
      $region20: #{mlp_predictor_pallas.2} parent=11 // pred_fallthru
        _
    $region12: #{mlp_predictor_pallas.2} parent=5 // pred_fallthru
      _
    %p169 = scmp.lt.s32.totalorder %s12, 4
    // Predicated region
    $region21: #{mlp_predictor_pallas.2} parent=5 // pred_check
      %p170 = pneg %p169
    $region22: #{mlp_predictor_pallas.2} parent=5 // pred_check_branch
      %172 = sbr.rel (%p170) target = $region24
    $region23: #{mlp_predictor_pallas.2} parent=5 // pred_region
      // Predicated region
      $region25: #{mlp_predictor_pallas.2} parent=23 // pred_check
        %p173 = pneg %p32
      $region26: #{mlp_predictor_pallas.2} parent=23 // pred_check_branch
        %175 = sbr.rel (%p173) target = $region28
      $region27: #{mlp_predictor_pallas.2} parent=23 // pred_region
        %s176 = smul.u32 8, %s12
        %s177 = ssub.s32 25, %s176
        %p178 = scmp.lt.s32.totalorder %s177, 8
        %s179 = scalar_select %p178, %s177, 8
        %s180 = smul.u32 128, %s179
        %p181 = scmp.lt.s32.totalorder %s176, 24
        %s182 = scalar_select %p181, %s176, 24
        %s183 = smul.addr %s182, 8
        %s184 = scalar_lea.vmem %s0, %s183
        %s185 = smul.u32 8, %s12
        %s186 = ssub.s32 25, %s185
        %p187 = scmp.lt.s32.totalorder %s186, 8
        %s188 = scalar_select %p187, %s186, 8
        %s189 = smul.u32 128, %s188
      $region28: #{mlp_predictor_pallas.2} parent=23 // pred_fallthru
        _
      // Predicated region
      $region29: #{mlp_predictor_pallas.2} parent=23 // pred_check
        %p190 = pneg %p58
      $region30: #{mlp_predictor_pallas.2} parent=23 // pred_check_branch
        %192 = sbr.rel (%p190) target = $region32
      $region31: #{mlp_predictor_pallas.2} parent=23 // pred_region
        %s193 = smul.u32 8, %s12
        %s194 = ssub.s32 25, %s193
        %p195 = scmp.lt.s32.totalorder %s194, 8
        %s196 = scalar_select %p195, %s194, 8
        %s197 = smul.u32 128, %s196
        %p198 = scmp.lt.s32.totalorder %s193, 24
        %s199 = scalar_select %p198, %s193, 24
        %s200 = smul.addr %s199, 8
        %s201 = scalar_lea.vmem %s1, %s200
        %s202 = smul.u32 8, %s12
        %s203 = ssub.s32 25, %s202
        %p204 = scmp.lt.s32.totalorder %s203, 8
        %s205 = scalar_select %p204, %s203, 8
        %s206 = smul.u32 128, %s205
      $region32: #{mlp_predictor_pallas.2} parent=23 // pred_fallthru
        _
    $region24: #{mlp_predictor_pallas.2} parent=5 // pred_fallthru
      _
    %p207 = scmp.le.s32.totalorder 1, %s12
    %p208 = scmp.lt.s32.totalorder %s12, 5
    %p209 = pnand %p207, %p208
    %p210 = pneg %p209
    // Predicated region
    $region33: #{mlp_predictor_pallas.2} parent=5 // pred_check
      _
    $region34: #{mlp_predictor_pallas.2} parent=5 // pred_check_branch
      %212 = sbr.rel (%p209) target = $region36
    $region35: #{mlp_predictor_pallas.2} parent=5 // pred_region
      %s213 = ssub.s32 %s12, 1
      %s214 = smul.u32 8, %s17
      %s215 = ssub.s32 25, %s214
      %p216 = scmp.lt.s32.totalorder %s215, 8
      %s217 = scalar_select %p216, %s215, 8
      %s218 = smul.u32 128, %s217
      %p219 = scmp.lt.s32.totalorder %s214, 24
      %s220 = scalar_select %p219, %s214, 24
      %s221 = smul.addr %s220, 8
      %s222 = scalar_lea.vmem %s0, %s221
      %p223 = pneg %p38
      %p224 = pneg %p35
      %s225 = smul.u32 8, %s17
      %s226 = ssub.s32 25, %s225
      %p227 = scmp.lt.s32.totalorder %s226, 8
      %s228 = scalar_select %p227, %s226, 8
      %s229 = smul.u32 128, %s228
      %p230 = scmp.lt.s32.totalorder %s225, 24
      %s231 = scalar_select %p230, %s225, 24
      %s232 = smul.addr %s231, 8
      %s233 = scalar_lea.vmem %s1, %s232
      %p234 = pneg %p64
      %p235 = pneg %p61
      %p236 = pneg %p85
      %p237 = pneg %p82
      %p238 = pneg %p106
      %p239 = pneg %p103
      %p240 = pneg %p127
      %p241 = pneg %p124
      %p242 = pneg %p148
      %p243 = pneg %p145
      %s244 = smul.u32 8, %s17
      %s245 = ssub.s32 25, %s244
      %p246 = scmp.lt.s32.totalorder %s245, 8
      %s247 = scalar_select %p246, %s245, 8
      %s248 = smul.u32 128, %s247
      %p249 = scmp.lt.s32.totalorder %s244, 24
      %s250 = scalar_select %p249, %s244, 24
      %s251 = smul.addr %s250, 8
      %s252 = scalar_lea.vmem %s0, %s251
      %s253 = smul.u32 8, %s17
      %s254 = ssub.s32 25, %s253
      %p255 = scmp.lt.s32.totalorder %s254, 8
      %s256 = scalar_select %p255, %s254, 8
      %s257 = smul.u32 128, %s256
      %s258 = smul.u32 8, %s17
      %s259 = ssub.s32 25, %s258
      %p260 = scmp.lt.s32.totalorder %s259, 8
      %s261 = scalar_select %p260, %s259, 8
      %s262 = smul.u32 128, %s261
      %p263 = scmp.lt.s32.totalorder %s258, 24
      %s264 = scalar_select %p263, %s258, 24
      %s265 = smul.addr %s264, 8
      %s266 = scalar_lea.vmem %s1, %s265
      %s267 = smul.u32 8, %s17
      %s268 = ssub.s32 25, %s267
      %p269 = scmp.lt.s32.totalorder %s268, 8
      %s270 = scalar_select %p269, %s268, 8
      %s271 = smul.u32 128, %s270
      %p272 = scmp.eq.s32.totalorder %s17, 0
      // Predicated region
      $region37: #{mlp_predictor_pallas.2} parent=35 // pred_check
        %p273 = pneg %p272
      $region38: #{mlp_predictor_pallas.2} parent=35 // pred_check_branch
        %275 = sbr.rel (%p273) target = $region40
      $region39: #{mlp_predictor_pallas.2} parent=35 // pred_region
        %vm276 = vcmask 253952
        %277 = vst.msk [vmem:[%s4] sm:$0x1] %vm276, 0.0
        %278 = vst.msk [vmem:[%s5] sm:$0x1] %vm276, 0.0
      $region40: #{mlp_predictor_pallas.2} parent=35 // pred_fallthru
        _
      %v279 = vld [vmem:[%s252] sm:$0xff]
      %v280 = vld [vmem:[%s252 + $0x8] sm:$0xff]
      %v281 = vld [vmem:[%s252 + $0x10] sm:$0xff]
      %v282 = vld [vmem:[%s252 + $0x18] sm:$0xff]
      %v283 = vld [vmem:[%s252 + $0x20] sm:$0xff]
      %v284 = vld [vmem:[%s252 + $0x28] sm:$0xff]
      %v285 = vld [vmem:[%s252 + $0x30] sm:$0xff]
      %v286 = vld [vmem:[%s252 + $0x38] sm:$0xff]
      %v287 = vld [vmem:[%s266] sm:$0xff]
      %v288 = vld [vmem:[%s266 + $0x8] sm:$0xff]
      %v289 = vld [vmem:[%s266 + $0x10] sm:$0xff]
      %v290 = vld [vmem:[%s266 + $0x18] sm:$0xff]
      %v291 = vld [vmem:[%s266 + $0x20] sm:$0xff]
      %v292 = vld [vmem:[%s266 + $0x28] sm:$0xff]
      %v293 = vld [vmem:[%s266 + $0x30] sm:$0xff]
      %v294 = vld [vmem:[%s266 + $0x38] sm:$0xff]
      %v295 = vmul.f32 %v279, %v287
      %v296 = vmul.f32 %v280, %v288
      %v297 = vmul.f32 %v281, %v289
      %v298 = vmul.f32 %v282, %v290
      %v299 = vmul.f32 %v283, %v291
      %v300 = vmul.f32 %v284, %v292
      %v301 = vmul.f32 %v285, %v293
      %v302 = vmul.f32 %v286, %v294
      %v303 = vld [vmem:[%s2] sm:$0xff]
      %v304 = vld [vmem:[%s2 + $0x8] sm:$0xff]
      %v305 = vld [vmem:[%s3] sm:$0x1]
      %v307 = vlaneseq
      %v308 = vshrl.u32 %v307, 7
      %v309 = vsub.s32 0, %v308
      %v310 = vrot.slane %v305, %v309
      %vm312 = vcmask 130048
      %v314 = vsel %vm312, %v295, 0
      %v317 = vsel %vm312, %v296, 0
      %v320 = vsel %vm312, %v297, 0
      %v323 = vsel %vm312, %v298, 0
      %v326 = vsel %vm312, %v299, 0
      %v329 = vsel %vm312, %v300, 0
      %v332 = vsel %vm312, %v301, 0
      %v335 = vsel %vm312, %v302, 0
      %337 = vmatprep.subr.mxu0 0.0
      %338 = vmatpush1.msra.mxu0 0.0
      %339 = vmatprep.subr.mxu0 0.0
      %340 = vmatpush1.msra.mxu0 0.0
      %341 = vmatprep.subr.mxu0 0.0
      %342 = vmatpush1.msra.mxu0 0.0
      %343 = vmatprep.subr.mxu0 0.0
      %344 = vmatpush1.msra.mxu0 0.0
      %345 = vmatprep.subr.mxu0 0.0
      %346 = vmatpush1.msra.mxu0 0.0
      %347 = vmatprep.subr.mxu0 0.0
      %348 = vmatpush1.msra.mxu0 0.0
      %349 = vmatprep.subr.mxu0 0.0
      %350 = vmatpush1.msra.mxu0 0.0
      %351 = vmatprep.subr.mxu0 0.0
      %352 = vmatpush1.msra.mxu0 0.0
      %353 = vmatprep.subr.mxu0 0.0
      %354 = vmatpush1.msra.mxu0 0.0
      %355 = vmatprep.subr.mxu0 0.0
      %356 = vmatpush1.msra.mxu0 0.0
      %357 = vmatprep.subr.mxu0 0.0
      %358 = vmatpush1.msra.mxu0 0.0
      %359 = vmatprep.subr.mxu0 0.0
      %360 = vmatpush1.msra.mxu0 0.0
      %361 = vmatprep.subr.mxu0 0.0
      %362 = vmatpush1.msra.mxu0 0.0
      %363 = vmatprep.subr.mxu0 0.0
      %364 = vmatpush1.msra.mxu0 0.0
      %365 = vmatprep.subr.mxu0 0.0
      %366 = vmatpush1.msra.mxu0 %v304
      %367 = vmatprep.subr.mxu0 0.0
      %368 = vmatpush1.msra.mxu0 %v303
      %369 = vmatprep.subr.mxu0 0.0
      %370 = vmatpush2.msra.mxu0 0.0
      %371 = vmatprep.subr.mxu0 0.0
      %372 = vmatpush2.msra.mxu0 0.0
      %373 = vmatprep.subr.mxu0 0.0
      %374 = vmatpush2.msra.mxu0 0.0
      %375 = vmatprep.subr.mxu0 0.0
      %376 = vmatpush2.msra.mxu0 0.0
      %377 = vmatprep.subr.mxu0 0.0
      %378 = vmatpush2.msra.mxu0 0.0
      %379 = vmatprep.subr.mxu0 0.0
      %380 = vmatpush2.msra.mxu0 0.0
      %381 = vmatprep.subr.mxu0 0.0
      %382 = vmatpush2.msra.mxu0 0.0
      %383 = vmatprep.subr.mxu0 0.0
      %384 = vmatpush2.msra.mxu0 0.0
      %385 = vmatprep.subr.mxu0 0.0
      %386 = vmatpush2.msra.mxu0 0.0
      %387 = vmatprep.subr.mxu0 0.0
      %388 = vmatpush2.msra.mxu0 0.0
      %389 = vmatprep.subr.mxu0 0.0
      %390 = vmatpush2.msra.mxu0 0.0
      %391 = vmatprep.subr.mxu0 0.0
      %392 = vmatpush2.msra.mxu0 0.0
      %393 = vmatprep.subr.mxu0 0.0
      %394 = vmatpush2.msra.mxu0 0.0
      %395 = vmatprep.subr.mxu0 0.0
      %396 = vmatpush2.msra.mxu0 0.0
      %397 = vmatprep.subr.mxu0 0.0
      %398 = vmatpush2.msra.mxu0 0.0
      %399 = vmatprep.subr.mxu0 0.0
      %400 = vmatpush2.msra.mxu0 0.0
      %401 = vmatprep.mubr.f32.mxu0 0.0
      %402 = vmatmul.mubr.f32.gmra.mxu0 %v314
      %v403 = vpop.f32.mrf.mxu0
      %v404 = vadd.f32 %v310, %v403
      %v405 = vpop.f32.mrf.mxu0
      %406 = vmatprep.mubr.f32.mxu0 0.0
      %407 = vmatmul.mubr.f32.gmra.mxu0 %v317
      %v408 = vpop.f32.mrf.mxu0
      %v409 = vadd.f32 %v310, %v408
      %v410 = vpop.f32.mrf.mxu0
      %411 = vmatprep.mubr.f32.mxu0 0.0
      %412 = vmatmul.mubr.f32.gmra.mxu0 %v320
      %v413 = vpop.f32.mrf.mxu0
      %v414 = vadd.f32 %v310, %v413
      %v415 = vpop.f32.mrf.mxu0
      %416 = vmatprep.mubr.f32.mxu0 0.0
      %417 = vmatmul.mubr.f32.gmra.mxu0 %v323
      %v418 = vpop.f32.mrf.mxu0
      %v419 = vadd.f32 %v310, %v418
      %v420 = vpop.f32.mrf.mxu0
      %421 = vmatprep.mubr.f32.mxu0 0.0
      %422 = vmatmul.mubr.f32.gmra.mxu0 %v326
      %v423 = vpop.f32.mrf.mxu0
      %v424 = vadd.f32 %v310, %v423
      %v425 = vpop.f32.mrf.mxu0
      %426 = vmatprep.mubr.f32.mxu0 0.0
      %427 = vmatmul.mubr.f32.gmra.mxu0 %v329
      %v428 = vpop.f32.mrf.mxu0
      %v429 = vadd.f32 %v310, %v428
      %v430 = vpop.f32.mrf.mxu0
      %431 = vmatprep.mubr.f32.mxu0 0.0
      %432 = vmatmul.mubr.f32.gmra.mxu0 %v332
      %v433 = vpop.f32.mrf.mxu0
      %v434 = vadd.f32 %v310, %v433
      %v435 = vpop.f32.mrf.mxu0
      %436 = vmatprep.mubr.f32.mxu0 0.0
      %437 = vmatmul.mubr.f32.gmra.mxu0 %v335
      %v438 = vpop.f32.mrf.mxu0
      %v439 = vadd.f32 %v310, %v438
      %v440 = vpop.f32.mrf.mxu0
      %441 = vdwg.mxu0
      %s442 = smul.u32 %s17, 64
      %v443 = vlaneseq
      %v444 = vshrl.u32 %v443, 7
      %v445 = vadd.s32 %v444, 8
      %v446 = vadd.s32 %v444, 16
      %v447 = vadd.s32 %v444, 24
      %v448 = vadd.s32 %v444, 32
      %v449 = vadd.s32 %v444, 40
      %v450 = vadd.s32 %v444, 48
      %v451 = vadd.s32 %v444, 56
      %v452 = vstv %s442
      %v453 = vadd.s32 %v452, %v444
      %v454 = vadd.s32 %v452, %v445
      %v455 = vadd.s32 %v452, %v446
      %v456 = vadd.s32 %v452, %v447
      %v457 = vadd.s32 %v452, %v448
      %v458 = vadd.s32 %v452, %v449
      %v459 = vadd.s32 %v452, %v450
      %v460 = vadd.s32 %v452, %v451
      %vm461 = vcmp.lt.s32.totalorder %v453, 200
      %vm462 = vcmp.lt.s32.totalorder %v454, 200
      %vm463 = vcmp.lt.s32.totalorder %v455, 200
      %vm464 = vcmp.lt.s32.totalorder %v456, 200
      %vm465 = vcmp.lt.s32.totalorder %v457, 200
      %vm466 = vcmp.lt.s32.totalorder %v458, 200
      %vm467 = vcmp.lt.s32.totalorder %v459, 200
      %vm468 = vcmp.lt.s32.totalorder %v460, 200
      %v469 = vsel %vm461, 1, 0
      %v470 = vsel %vm462, 1, 0
      %v471 = vsel %vm463, 1, 0
      %v472 = vsel %vm464, 1, 0
      %v473 = vsel %vm465, 1, 0
      %v474 = vsel %vm466, 1, 0
      %v475 = vsel %vm467, 1, 0
      %v476 = vsel %vm468, 1, 0
      %vm477 = vcmp.eq.s32.totalorder %v469, 1
      %vm478 = vcmp.eq.s32.totalorder %v470, 1
      %vm479 = vcmp.eq.s32.totalorder %v471, 1
      %vm480 = vcmp.eq.s32.totalorder %v472, 1
      %vm481 = vcmp.eq.s32.totalorder %v473, 1
      %vm482 = vcmp.eq.s32.totalorder %v474, 1
      %vm483 = vcmp.eq.s32.totalorder %v475, 1
      %vm484 = vcmp.eq.s32.totalorder %v476, 1
      %v485 = vsel %vm477, %v404, 0.0
      %v486 = vsel %vm478, %v409, 0.0
      %v487 = vsel %vm479, %v414, 0.0
      %v488 = vsel %vm480, %v419, 0.0
      %v489 = vsel %vm481, %v424, 0.0
      %v490 = vsel %vm482, %v429, 0.0
      %v491 = vsel %vm483, %v434, 0.0
      %v492 = vsel %vm484, %v439, 0.0
      %v493 = vld [vmem:[%s4] sm:$0x1]
      %vm494 = vcmask 261120
      %v495 = vsel %vm494, %v485, 0.0
      %v496 = vsel %vm494, %v486, 0.0
      %v497 = vadd.f32 %v495, %v496
      %v498 = vsel %vm494, %v487, 0.0
      %v499 = vadd.f32 %v497, %v498
      %v500 = vsel %vm494, %v488, 0.0
      %v501 = vadd.f32 %v499, %v500
      %v502 = vsel %vm494, %v489, 0.0
      %v503 = vadd.f32 %v501, %v502
      %v504 = vsel %vm494, %v490, 0.0
      %v505 = vadd.f32 %v503, %v504
      %v506 = vsel %vm494, %v491, 0.0
      %v507 = vadd.f32 %v505, %v506
      %v508 = vsel %vm494, %v492, 0.0
      %v509 = vadd.f32 %v507, %v508
      %v510 = vrot.slane %v509, 4
      %v511 = vadd.f32 %v509, %v510
      %v512 = vrot.slane %v511, 2
      %v513 = vadd.f32 %v511, %v512
      %v514 = vrot.slane %v513, 1
      %v515 = vadd.f32 %v513, %v514
      %v516 = vadd.f32 %v493, %v515
      %vm517 = vcmask 253952
      %518 = vst.msk [vmem:[%s4] sm:$0x1] %vm517, %v516
      %v519 = vld [vmem:[%s5] sm:$0x1]
      %v520 = vmul.f32 %v485, %v485
      %v521 = vmul.f32 %v486, %v486
      %v522 = vmul.f32 %v487, %v487
      %v523 = vmul.f32 %v488, %v488
      %v524 = vmul.f32 %v489, %v489
      %v525 = vmul.f32 %v490, %v490
      %v526 = vmul.f32 %v491, %v491
      %v527 = vmul.f32 %v492, %v492
      %v528 = vsel %vm494, %v520, 0.0
      %v529 = vsel %vm494, %v521, 0.0
      %v530 = vadd.f32 %v528, %v529
      %v531 = vsel %vm494, %v522, 0.0
      %v532 = vadd.f32 %v530, %v531
      %v533 = vsel %vm494, %v523, 0.0
      %v534 = vadd.f32 %v532, %v533
      %v535 = vsel %vm494, %v524, 0.0
      %v536 = vadd.f32 %v534, %v535
      %v537 = vsel %vm494, %v525, 0.0
      %v538 = vadd.f32 %v536, %v537
      %v539 = vsel %vm494, %v526, 0.0
      %v540 = vadd.f32 %v538, %v539
      %v541 = vsel %vm494, %v527, 0.0
      %v542 = vadd.f32 %v540, %v541
      %v543 = vrot.slane %v542, 4
      %v544 = vadd.f32 %v542, %v543
      %v545 = vrot.slane %v544, 2
      %v546 = vadd.f32 %v544, %v545
      %v547 = vrot.slane %v546, 1
      %v548 = vadd.f32 %v546, %v547
      %v549 = vadd.f32 %v519, %v548
      %550 = vst.msk [vmem:[%s5] sm:$0x1] %vm517, %v549
      // Predicated region
      $region41: #{mlp_predictor_pallas.2} parent=35 // pred_check
        %p551 = pneg %p124
      $region42: #{mlp_predictor_pallas.2} parent=35 // pred_check_branch
        %553 = sbr.rel (%p551) target = $region44
      $region43: #{mlp_predictor_pallas.2} parent=35 // pred_region
        _
      $region44: #{mlp_predictor_pallas.2} parent=35 // pred_fallthru
        _
      // Predicated region
      $region45: #{mlp_predictor_pallas.2} parent=35 // pred_check
        %p554 = pneg %p145
      $region46: #{mlp_predictor_pallas.2} parent=35 // pred_check_branch
        %556 = sbr.rel (%p554) target = $region48
      $region47: #{mlp_predictor_pallas.2} parent=35 // pred_region
        _
      $region48: #{mlp_predictor_pallas.2} parent=35 // pred_fallthru
        _
      // Predicated region
      $region49: #{mlp_predictor_pallas.2} parent=35 // pred_check
        %p557 = pneg %p124
      $region50: #{mlp_predictor_pallas.2} parent=35 // pred_check_branch
        %559 = sbr.rel (%p557) target = $region52
      $region51: #{mlp_predictor_pallas.2} parent=35 // pred_region
        _
      $region52: #{mlp_predictor_pallas.2} parent=35 // pred_fallthru
        _
      // Predicated region
      $region53: #{mlp_predictor_pallas.2} parent=35 // pred_check
        %p560 = pneg %p145
      $region54: #{mlp_predictor_pallas.2} parent=35 // pred_check_branch
        %562 = sbr.rel (%p560) target = $region56
      $region55: #{mlp_predictor_pallas.2} parent=35 // pred_region
        _
      $region56: #{mlp_predictor_pallas.2} parent=35 // pred_fallthru
        _
    $region36: #{mlp_predictor_pallas.2} parent=5 // pred_fallthru
      _
    %p563 = scmp.le.s32.totalorder 2, %s12
    // Predicated region
    $region57: #{mlp_predictor_pallas.2} parent=5 // pred_check
      %p564 = pneg %p563
    $region58: #{mlp_predictor_pallas.2} parent=5 // pred_check_branch
      %566 = sbr.rel (%p564) target = $region60
    $region59: #{mlp_predictor_pallas.2} parent=5 // pred_region
      %s567 = ssub.s32 %s12, 2
    $region60: #{mlp_predictor_pallas.2} parent=5 // pred_fallthru
      _
  $region6: #{mlp_predictor_pallas.2} parent=0 // loop_footer
    %s16 = sadd.s32 1, %s12
  $region7: #{mlp_predictor_pallas.2} parent=0 // loop_footer_branch
    %11 = sbr.rel target = $region3
  $region8: #{mlp_predictor_pallas.2} parent=0 // loop_exit
    _

// kernel: mlp_predictor_pallas.3
$region0: #{mlp_predictor_pallas.3}
  #allocation0 [shape = 'u32[]', space=smem, size = 0x4, offset = 0x4, fixed_abs, tag = 'smem constant byte address 0x4 - core index']
  #allocation1 [shape = 'u32[144,128]{1,0:T(1,128)}', space=vmem, size = 0x12000, scoped, tag = 'internal scratch']
  %s0 = inlined_call_operand.vmem [shape: f32[200,16], index: 0, kind: input, shape index: {}]
  %s1 = inlined_call_operand.vmem [shape: f32[200,16], index: 1, kind: input, shape index: {}]
  %s2 = inlined_call_operand.vmem [shape: f32[16,32], index: 2, kind: input, shape index: {}]
  %s3 = inlined_call_operand.vmem [shape: f32[1,32], index: 3, kind: input, shape index: {}]
  %s4 = inlined_call_operand.vmem [shape: f32[32,4], index: 4, kind: input, shape index: {}]
  %s5 = inlined_call_operand.vmem [shape: f32[1,4], index: 5, kind: input, shape index: {}]
  %s6 = inlined_call_operand.vmem [shape: f32[200,4], index: 6, kind: output, shape index: {}]
  %s7 = sld [smem:[#allocation0]]
  $region105: #{mlp_predictor_pallas.3} parent=0
    _
  %s9 = ssub.s32 1, %s7
  %s10 = scalar_select 0, %s9, %s7
  $region1: #{mlp_predictor_pallas.3} parent=0
    #allocation2 [shape = 'u8[65536]{0}', space=vmem, size = 0x10000, scoped, tag = 'output window, operand 0']
    loop: start=0, step=1, limit=6
    $region2: #{mlp_predictor_pallas.3} parent=1 // loop_pre_header
      _
    $region3: #{mlp_predictor_pallas.3} parent=1 // loop_header
      %s12 = sphi 0, %s16
      %p13 = scmp.ge.s32.totalorder %s12, 6
      %s22 = sphi 0, %s24
      %s25 = sphi 0, %s22
      %s26 = sphi 0, %s25
      %s42 = sphi 0, %s26
      %s48 = sphi 0, %s50
      %s51 = sphi 0, %s48
      %s52 = sphi 0, %s51
      %s68 = sphi 0, %s52
      %s72 = sphi 0, %s72
      %s74 = sphi 0, %s72
      %s75 = sphi 0, %s74
      %s89 = sphi 0, %s75
      %s93 = sphi 0, %s93
      %s95 = sphi 0, %s93
      %s96 = sphi 0, %s95
      %s110 = sphi 0, %s96
      %s114 = sphi 0, %s114
      %s116 = sphi 0, %s114
      %s117 = sphi 0, %s116
      %s131 = sphi 0, %s117
      %s135 = sphi 0, %s135
      %s137 = sphi 0, %s135
      %s138 = sphi 0, %s137
      %s152 = sphi 0, %s138
      %s158 = sphi 0, %s160
      %s161 = sphi 0, %s158
      %s162 = sphi 0, %s161
      %s178 = sphi 0, %s162
    $region4: #{mlp_predictor_pallas.3} parent=1 // loop_header_branch
      %15 = sbr.rel (%p13) target = $region8
    $region5: #{mlp_predictor_pallas.3} parent=1 // loop_body
      %s17 = ssub.s32 %s12, 1
      %s18 = ssub.s32 %s12, 2
      %s19 = sadd.s32 %s12, 1
      %s20 = ssub.s32 %s12, %s19
      %p21 = scmp.eq.s32.totalorder %s20, 0
      %s23 = sadd.s32 %s22, 1
      %s24 = scalar_select %p21, %s22, %s23
      %p27 = pneg %p21
      %p28 = scmp.eq.s32.totalorder %s12, 3
      %p29 = por %p27, %p28
      %p30 = scmp.ne.s32.totalorder %s22, %s25
      %p31 = scmp.eq.s32.totalorder %s12, 0
      %p32 = por %p30, %p31
      %p33 = scmp.ne.s32.totalorder %s22, %s25
      %p34 = scmp.eq.s32.totalorder %s17, 3
      %p35 = por %p33, %p34
      %p36 = scmp.ne.s32.totalorder %s25, %s26
      %p37 = scmp.eq.s32.totalorder %s17, 0
      %p38 = por %p36, %p37
      %p39 = scmp.ne.s32.totalorder %s25, %s26
      %p40 = scmp.eq.s32.totalorder %s18, 3
      %p41 = por %p39, %p40
      %p43 = scmp.ne.s32.totalorder %s26, %s42
      %p44 = scmp.eq.s32.totalorder %s18, 0
      %p45 = por %p43, %p44
      %s46 = ssub.s32 %s12, %s19
      %p47 = scmp.eq.s32.totalorder %s46, 0
      %s49 = sadd.s32 %s48, 1
      %s50 = scalar_select %p47, %s48, %s49
      %p53 = pneg %p47
      %p54 = scmp.eq.s32.totalorder %s12, 3
      %p55 = por %p53, %p54
      %p56 = scmp.ne.s32.totalorder %s48, %s51
      %p57 = scmp.eq.s32.totalorder %s12, 0
      %p58 = por %p56, %p57
      %p59 = scmp.ne.s32.totalorder %s48, %s51
      %p60 = scmp.eq.s32.totalorder %s17, 3
      %p61 = por %p59, %p60
      %p62 = scmp.ne.s32.totalorder %s51, %s52
      %p63 = scmp.eq.s32.totalorder %s17, 0
      %p64 = por %p62, %p63
      %p65 = scmp.ne.s32.totalorder %s51, %s52
      %p66 = scmp.eq.s32.totalorder %s18, 3
      %p67 = por %p65, %p66
      %p69 = scmp.ne.s32.totalorder %s52, %s68
      %p70 = scmp.eq.s32.totalorder %s18, 0
      %p71 = por %p69, %p70
      %s73 = sadd.s32 %s72, 1
      %p76 = scmp.eq.s32.totalorder %s12, 3
      %p77 = scmp.ne.s32.totalorder %s72, %s74
      %p78 = scmp.eq.s32.totalorder %s12, 0
      %p79 = por %p77, %p78
      %p80 = scmp.ne.s32.totalorder %s72, %s74
      %p81 = scmp.eq.s32.totalorder %s17, 3
      %p82 = por %p80, %p81
      %p83 = scmp.ne.s32.totalorder %s74, %s75
      %p84 = scmp.eq.s32.totalorder %s17, 0
      %p85 = por %p83, %p84
      %p86 = scmp.ne.s32.totalorder %s74, %s75
      %p87 = scmp.eq.s32.totalorder %s18, 3
      %p88 = por %p86, %p87
      %p90 = scmp.ne.s32.totalorder %s75, %s89
      %p91 = scmp.eq.s32.totalorder %s18, 0
      %p92 = por %p90, %p91
      %s94 = sadd.s32 %s93, 1
      %p97 = scmp.eq.s32.totalorder %s12, 3
      %p98 = scmp.ne.s32.totalorder %s93, %s95
      %p99 = scmp.eq.s32.totalorder %s12, 0
      %p100 = por %p98, %p99
      %p101 = scmp.ne.s32.totalorder %s93, %s95
      %p102 = scmp.eq.s32.totalorder %s17, 3
      %p103 = por %p101, %p102
      %p104 = scmp.ne.s32.totalorder %s95, %s96
      %p105 = scmp.eq.s32.totalorder %s17, 0
      %p106 = por %p104, %p105
      %p107 = scmp.ne.s32.totalorder %s95, %s96
      %p108 = scmp.eq.s32.totalorder %s18, 3
      %p109 = por %p107, %p108
      %p111 = scmp.ne.s32.totalorder %s96, %s110
      %p112 = scmp.eq.s32.totalorder %s18, 0
      %p113 = por %p111, %p112
      %s115 = sadd.s32 %s114, 1
      %p118 = scmp.eq.s32.totalorder %s12, 3
      %p119 = scmp.ne.s32.totalorder %s114, %s116
      %p120 = scmp.eq.s32.totalorder %s12, 0
      %p121 = por %p119, %p120
      %p122 = scmp.ne.s32.totalorder %s114, %s116
      %p123 = scmp.eq.s32.totalorder %s17, 3
      %p124 = por %p122, %p123
      %p125 = scmp.ne.s32.totalorder %s116, %s117
      %p126 = scmp.eq.s32.totalorder %s17, 0
      %p127 = por %p125, %p126
      %p128 = scmp.ne.s32.totalorder %s116, %s117
      %p129 = scmp.eq.s32.totalorder %s18, 3
      %p130 = por %p128, %p129
      %p132 = scmp.ne.s32.totalorder %s117, %s131
      %p133 = scmp.eq.s32.totalorder %s18, 0
      %p134 = por %p132, %p133
      %s136 = sadd.s32 %s135, 1
      %p139 = scmp.eq.s32.totalorder %s12, 3
      %p140 = scmp.ne.s32.totalorder %s135, %s137
      %p141 = scmp.eq.s32.totalorder %s12, 0
      %p142 = por %p140, %p141
      %p143 = scmp.ne.s32.totalorder %s135, %s137
      %p144 = scmp.eq.s32.totalorder %s17, 3
      %p145 = por %p143, %p144
      %p146 = scmp.ne.s32.totalorder %s137, %s138
      %p147 = scmp.eq.s32.totalorder %s17, 0
      %p148 = por %p146, %p147
      %p149 = scmp.ne.s32.totalorder %s137, %s138
      %p150 = scmp.eq.s32.totalorder %s18, 3
      %p151 = por %p149, %p150
      %p153 = scmp.ne.s32.totalorder %s138, %s152
      %p154 = scmp.eq.s32.totalorder %s18, 0
      %p155 = por %p153, %p154
      %s156 = ssub.s32 %s12, %s19
      %p157 = scmp.eq.s32.totalorder %s156, 0
      %s159 = sadd.s32 %s158, 1
      %s160 = scalar_select %p157, %s158, %s159
      %p163 = pneg %p157
      %p164 = scmp.eq.s32.totalorder %s12, 3
      %p165 = por %p163, %p164
      %p166 = scmp.ne.s32.totalorder %s158, %s161
      %p167 = scmp.eq.s32.totalorder %s12, 0
      %p168 = por %p166, %p167
      %p169 = scmp.ne.s32.totalorder %s158, %s161
      %p170 = scmp.eq.s32.totalorder %s17, 3
      %p171 = por %p169, %p170
      %p172 = scmp.ne.s32.totalorder %s161, %s162
      %p173 = scmp.eq.s32.totalorder %s17, 0
      %p174 = por %p172, %p173
      %p175 = scmp.ne.s32.totalorder %s161, %s162
      %p176 = scmp.eq.s32.totalorder %s18, 3
      %p177 = por %p175, %p176
      %p179 = scmp.ne.s32.totalorder %s162, %s178
      %p180 = scmp.eq.s32.totalorder %s18, 0
      %p181 = por %p179, %p180
      %p182 = scmp.le.s32.totalorder 1, %s12
      %p183 = scmp.lt.s32.totalorder %s12, 5
      %p184 = pnand %p182, %p183
      %p185 = pneg %p184
      // Predicated region
      $region9: #{mlp_predictor_pallas.3} parent=5 // pred_check
        _
      $region10: #{mlp_predictor_pallas.3} parent=5 // pred_check_branch
        %187 = sbr.rel (%p184) target = $region12
      $region11: #{mlp_predictor_pallas.3} parent=5 // pred_region
        %s188 = ssub.s32 %s12, 1
        // Predicated region
        $region13: #{mlp_predictor_pallas.3} parent=11 // pred_check
          %p189 = pneg %p85
        $region14: #{mlp_predictor_pallas.3} parent=11 // pred_check_branch
          %191 = sbr.rel (%p189) target = $region16
        $region15: #{mlp_predictor_pallas.3} parent=11 // pred_region
          _
        $region16: #{mlp_predictor_pallas.3} parent=11 // pred_fallthru
          _
        // Predicated region
        $region17: #{mlp_predictor_pallas.3} parent=11 // pred_check
          %p192 = pneg %p106
        $region18: #{mlp_predictor_pallas.3} parent=11 // pred_check_branch
          %194 = sbr.rel (%p192) target = $region20
        $region19: #{mlp_predictor_pallas.3} parent=11 // pred_region
          _
        $region20: #{mlp_predictor_pallas.3} parent=11 // pred_fallthru
          _
        // Predicated region
        $region21: #{mlp_predictor_pallas.3} parent=11 // pred_check
          %p195 = pneg %p127
        $region22: #{mlp_predictor_pallas.3} parent=11 // pred_check_branch
          %197 = sbr.rel (%p195) target = $region24
        $region23: #{mlp_predictor_pallas.3} parent=11 // pred_region
          _
        $region24: #{mlp_predictor_pallas.3} parent=11 // pred_fallthru
          _
        // Predicated region
        $region25: #{mlp_predictor_pallas.3} parent=11 // pred_check
          %p198 = pneg %p148
        $region26: #{mlp_predictor_pallas.3} parent=11 // pred_check_branch
          %200 = sbr.rel (%p198) target = $region28
        $region27: #{mlp_predictor_pallas.3} parent=11 // pred_region
          _
        $region28: #{mlp_predictor_pallas.3} parent=11 // pred_fallthru
          _
      $region12: #{mlp_predictor_pallas.3} parent=5 // pred_fallthru
        _
      %p201 = scmp.lt.s32.totalorder %s12, 4
      // Predicated region
      $region29: #{mlp_predictor_pallas.3} parent=5 // pred_check
        %p202 = pneg %p201
      $region30: #{mlp_predictor_pallas.3} parent=5 // pred_check_branch
        %204 = sbr.rel (%p202) target = $region32
      $region31: #{mlp_predictor_pallas.3} parent=5 // pred_region
        // Predicated region
        $region33: #{mlp_predictor_pallas.3} parent=31 // pred_check
          %p205 = pneg %p32
        $region34: #{mlp_predictor_pallas.3} parent=31 // pred_check_branch
          %207 = sbr.rel (%p205) target = $region36
        $region35: #{mlp_predictor_pallas.3} parent=31 // pred_region
          %s208 = smul.u32 8, %s12
          %s209 = ssub.s32 25, %s208
          %p210 = scmp.lt.s32.totalorder %s209, 8
          %s211 = scalar_select %p210, %s209, 8
          %s212 = smul.u32 128, %s211
          %p213 = scmp.lt.s32.totalorder %s208, 24
          %s214 = scalar_select %p213, %s208, 24
          %s215 = smul.addr %s214, 8
          %s216 = scalar_lea.vmem %s0, %s215
          %s217 = smul.u32 8, %s12
          %s218 = ssub.s32 25, %s217
          %p219 = scmp.lt.s32.totalorder %s218, 8
          %s220 = scalar_select %p219, %s218, 8
          %s221 = smul.u32 128, %s220
        $region36: #{mlp_predictor_pallas.3} parent=31 // pred_fallthru
          _
        // Predicated region
        $region37: #{mlp_predictor_pallas.3} parent=31 // pred_check
          %p222 = pneg %p58
        $region38: #{mlp_predictor_pallas.3} parent=31 // pred_check_branch
          %224 = sbr.rel (%p222) target = $region40
        $region39: #{mlp_predictor_pallas.3} parent=31 // pred_region
          %s225 = smul.u32 8, %s12
          %s226 = ssub.s32 25, %s225
          %p227 = scmp.lt.s32.totalorder %s226, 8
          %s228 = scalar_select %p227, %s226, 8
          %s229 = smul.u32 128, %s228
          %p230 = scmp.lt.s32.totalorder %s225, 24
          %s231 = scalar_select %p230, %s225, 24
          %s232 = smul.addr %s231, 8
          %s233 = scalar_lea.vmem %s1, %s232
          %s234 = smul.u32 8, %s12
          %s235 = ssub.s32 25, %s234
          %p236 = scmp.lt.s32.totalorder %s235, 8
          %s237 = scalar_select %p236, %s235, 8
          %s238 = smul.u32 128, %s237
        $region40: #{mlp_predictor_pallas.3} parent=31 // pred_fallthru
          _
      $region32: #{mlp_predictor_pallas.3} parent=5 // pred_fallthru
        _
      %p239 = scmp.le.s32.totalorder 1, %s12
      %p240 = scmp.lt.s32.totalorder %s12, 5
      %p241 = pnand %p239, %p240
      %p242 = pneg %p241
      // Predicated region
      $region41: #{mlp_predictor_pallas.3} parent=5 // pred_check
        _
      $region42: #{mlp_predictor_pallas.3} parent=5 // pred_check_branch
        %244 = sbr.rel (%p241) target = $region44
      $region43: #{mlp_predictor_pallas.3} parent=5 // pred_region
        %s245 = ssub.s32 %s12, 1
        %s246 = smul.u32 8, %s17
        %s247 = ssub.s32 25, %s246
        %p248 = scmp.lt.s32.totalorder %s247, 8
        %s249 = scalar_select %p248, %s247, 8
        %s250 = smul.u32 128, %s249
        %p251 = scmp.lt.s32.totalorder %s246, 24
        %s252 = scalar_select %p251, %s246, 24
        %s253 = smul.addr %s252, 8
        %s254 = scalar_lea.vmem %s0, %s253
        %p255 = pneg %p38
        %p256 = pneg %p35
        %s257 = smul.u32 8, %s17
        %s258 = ssub.s32 25, %s257
        %p259 = scmp.lt.s32.totalorder %s258, 8
        %s260 = scalar_select %p259, %s258, 8
        %s261 = smul.u32 128, %s260
        %p262 = scmp.lt.s32.totalorder %s257, 24
        %s263 = scalar_select %p262, %s257, 24
        %s264 = smul.addr %s263, 8
        %s265 = scalar_lea.vmem %s1, %s264
        %p266 = pneg %p64
        %p267 = pneg %p61
        %p268 = pneg %p85
        %p269 = pneg %p82
        %p270 = pneg %p106
        %p271 = pneg %p103
        %p272 = pneg %p127
        %p273 = pneg %p124
        %p274 = pneg %p148
        %p275 = pneg %p145
        %p276 = pneg %p174
        %p277 = pneg %p171
        %s278 = sand.u32 %s161, 1
        %s279 = sand.u32 %s161, 1
        %s280 = smul.addr %s279, 64
        %s281 = scalar_lea.vmem [#allocation2], %s280
        %s282 = smul.u32 8, %s17
        %s283 = ssub.s32 25, %s282
        %p284 = scmp.lt.s32.totalorder %s283, 8
        %s285 = scalar_select %p284, %s283, 8
        %s286 = smul.u32 128, %s285
        %p287 = scmp.lt.s32.totalorder %s282, 24
        %s288 = scalar_select %p287, %s282, 24
        %s289 = smul.addr %s288, 8
        %s290 = scalar_lea.vmem %s0, %s289
        %s291 = smul.u32 8, %s17
        %s292 = ssub.s32 25, %s291
        %p293 = scmp.lt.s32.totalorder %s292, 8
        %s294 = scalar_select %p293, %s292, 8
        %s295 = smul.u32 128, %s294
        %s296 = smul.u32 8, %s17
        %s297 = ssub.s32 25, %s296
        %p298 = scmp.lt.s32.totalorder %s297, 8
        %s299 = scalar_select %p298, %s297, 8
        %s300 = smul.u32 128, %s299
        %p301 = scmp.lt.s32.totalorder %s296, 24
        %s302 = scalar_select %p301, %s296, 24
        %s303 = smul.addr %s302, 8
        %s304 = scalar_lea.vmem %s1, %s303
        %s305 = smul.u32 8, %s17
        %s306 = ssub.s32 25, %s305
        %p307 = scmp.lt.s32.totalorder %s306, 8
        %s308 = scalar_select %p307, %s306, 8
        %s309 = smul.u32 128, %s308
        %s310 = smul.u32 8, %s17
        %s311 = ssub.s32 25, %s310
        %p312 = scmp.lt.s32.totalorder %s311, 8
        %s313 = scalar_select %p312, %s311, 8
        %s314 = smul.u32 128, %s313
        %v315 = vld [vmem:[%s290] sm:$0xff]
        %v316 = vld [vmem:[%s290 + $0x8] sm:$0xff]
        %v317 = vld [vmem:[%s290 + $0x10] sm:$0xff]
        %v318 = vld [vmem:[%s290 + $0x18] sm:$0xff]
        %v319 = vld [vmem:[%s290 + $0x20] sm:$0xff]
        %v320 = vld [vmem:[%s290 + $0x28] sm:$0xff]
        %v321 = vld [vmem:[%s290 + $0x30] sm:$0xff]
        %v322 = vld [vmem:[%s290 + $0x38] sm:$0xff]
        %v323 = vld [vmem:[%s304] sm:$0xff]
        %v324 = vld [vmem:[%s304 + $0x8] sm:$0xff]
        %v325 = vld [vmem:[%s304 + $0x10] sm:$0xff]
        %v326 = vld [vmem:[%s304 + $0x18] sm:$0xff]
        %v327 = vld [vmem:[%s304 + $0x20] sm:$0xff]
        %v328 = vld [vmem:[%s304 + $0x28] sm:$0xff]
        %v329 = vld [vmem:[%s304 + $0x30] sm:$0xff]
        %v330 = vld [vmem:[%s304 + $0x38] sm:$0xff]
        %v331 = vmul.f32 %v315, %v323
        %v332 = vmul.f32 %v316, %v324
        %v333 = vmul.f32 %v317, %v325
        %v334 = vmul.f32 %v318, %v326
        %v335 = vmul.f32 %v319, %v327
        %v336 = vmul.f32 %v320, %v328
        %v337 = vmul.f32 %v321, %v329
        %v338 = vmul.f32 %v322, %v330
        %v339 = vld [vmem:[%s2] sm:$0xff]
        %v340 = vld [vmem:[%s2 + $0x8] sm:$0xff]
        %v341 = vld [vmem:[%s3] sm:$0x1]
        %v343 = vlaneseq
        %v344 = vshrl.u32 %v343, 7
        %v345 = vsub.s32 0, %v344
        %v346 = vrot.slane %v341, %v345
        %vm348 = vcmask 130048
        %v350 = vsel %vm348, %v331, 0
        %v353 = vsel %vm348, %v332, 0
        %v356 = vsel %vm348, %v333, 0
        %v359 = vsel %vm348, %v334, 0
        %v362 = vsel %vm348, %v335, 0
        %v365 = vsel %vm348, %v336, 0
        %v368 = vsel %vm348, %v337, 0
        %v371 = vsel %vm348, %v338, 0
        %373 = vmatprep.subr.mxu0 0.0
        %374 = vmatpush1.msra.mxu0 0.0
        %375 = vmatprep.subr.mxu0 0.0
        %376 = vmatpush1.msra.mxu0 0.0
        %377 = vmatprep.subr.mxu0 0.0
        %378 = vmatpush1.msra.mxu0 0.0
        %379 = vmatprep.subr.mxu0 0.0
        %380 = vmatpush1.msra.mxu0 0.0
        %381 = vmatprep.subr.mxu0 0.0
        %382 = vmatpush1.msra.mxu0 0.0
        %383 = vmatprep.subr.mxu0 0.0
        %384 = vmatpush1.msra.mxu0 0.0
        %385 = vmatprep.subr.mxu0 0.0
        %386 = vmatpush1.msra.mxu0 0.0
        %387 = vmatprep.subr.mxu0 0.0
        %388 = vmatpush1.msra.mxu0 0.0
        %389 = vmatprep.subr.mxu0 0.0
        %390 = vmatpush1.msra.mxu0 0.0
        %391 = vmatprep.subr.mxu0 0.0
        %392 = vmatpush1.msra.mxu0 0.0
        %393 = vmatprep.subr.mxu0 0.0
        %394 = vmatpush1.msra.mxu0 0.0
        %395 = vmatprep.subr.mxu0 0.0
        %396 = vmatpush1.msra.mxu0 0.0
        %397 = vmatprep.subr.mxu0 0.0
        %398 = vmatpush1.msra.mxu0 0.0
        %399 = vmatprep.subr.mxu0 0.0
        %400 = vmatpush1.msra.mxu0 0.0
        %401 = vmatprep.subr.mxu0 0.0
        %402 = vmatpush1.msra.mxu0 %v340
        %403 = vmatprep.subr.mxu0 0.0
        %404 = vmatpush1.msra.mxu0 %v339
        %405 = vmatprep.subr.mxu0 0.0
        %406 = vmatpush2.msra.mxu0 0.0
        %407 = vmatprep.subr.mxu0 0.0
        %408 = vmatpush2.msra.mxu0 0.0
        %409 = vmatprep.subr.mxu0 0.0
        %410 = vmatpush2.msra.mxu0 0.0
        %411 = vmatprep.subr.mxu0 0.0
        %412 = vmatpush2.msra.mxu0 0.0
        %413 = vmatprep.subr.mxu0 0.0
        %414 = vmatpush2.msra.mxu0 0.0
        %415 = vmatprep.subr.mxu0 0.0
        %416 = vmatpush2.msra.mxu0 0.0
        %417 = vmatprep.subr.mxu0 0.0
        %418 = vmatpush2.msra.mxu0 0.0
        %419 = vmatprep.subr.mxu0 0.0
        %420 = vmatpush2.msra.mxu0 0.0
        %421 = vmatprep.subr.mxu0 0.0
        %422 = vmatpush2.msra.mxu0 0.0
        %423 = vmatprep.subr.mxu0 0.0
        %424 = vmatpush2.msra.mxu0 0.0
        %425 = vmatprep.subr.mxu0 0.0
        %426 = vmatpush2.msra.mxu0 0.0
        %427 = vmatprep.subr.mxu0 0.0
        %428 = vmatpush2.msra.mxu0 0.0
        %429 = vmatprep.subr.mxu0 0.0
        %430 = vmatpush2.msra.mxu0 0.0
        %431 = vmatprep.subr.mxu0 0.0
        %432 = vmatpush2.msra.mxu0 0.0
        %433 = vmatprep.subr.mxu0 0.0
        %434 = vmatpush2.msra.mxu0 0.0
        %435 = vmatprep.subr.mxu0 0.0
        %436 = vmatpush2.msra.mxu0 0.0
        %437 = vmatprep.mubr.f32.mxu0 0.0
        %438 = vmatmul.mubr.f32.gmra.mxu0 %v350
        %v439 = vpop.f32.mrf.mxu0
        %v440 = vadd.f32 %v346, %v439
        %v441 = vpop.f32.mrf.mxu0
        %442 = vmatprep.mubr.f32.mxu0 0.0
        %443 = vmatmul.mubr.f32.gmra.mxu0 %v353
        %v444 = vpop.f32.mrf.mxu0
        %v445 = vadd.f32 %v346, %v444
        %v446 = vpop.f32.mrf.mxu0
        %447 = vmatprep.mubr.f32.mxu0 0.0
        %448 = vmatmul.mubr.f32.gmra.mxu0 %v356
        %v449 = vpop.f32.mrf.mxu0
        %v450 = vadd.f32 %v346, %v449
        %v451 = vpop.f32.mrf.mxu0
        %452 = vmatprep.mubr.f32.mxu0 0.0
        %453 = vmatmul.mubr.f32.gmra.mxu0 %v359
        %v454 = vpop.f32.mrf.mxu0
        %v455 = vadd.f32 %v346, %v454
        %v456 = vpop.f32.mrf.mxu0
        %457 = vmatprep.mubr.f32.mxu0 0.0
        %458 = vmatmul.mubr.f32.gmra.mxu0 %v362
        %v459 = vpop.f32.mrf.mxu0
        %v460 = vadd.f32 %v346, %v459
        %v461 = vpop.f32.mrf.mxu0
        %462 = vmatprep.mubr.f32.mxu0 0.0
        %463 = vmatmul.mubr.f32.gmra.mxu0 %v365
        %v464 = vpop.f32.mrf.mxu0
        %v465 = vadd.f32 %v346, %v464
        %v466 = vpop.f32.mrf.mxu0
        %467 = vmatprep.mubr.f32.mxu0 0.0
        %468 = vmatmul.mubr.f32.gmra.mxu0 %v368
        %v469 = vpop.f32.mrf.mxu0
        %v470 = vadd.f32 %v346, %v469
        %v471 = vpop.f32.mrf.mxu0
        %472 = vmatprep.mubr.f32.mxu0 0.0
        %473 = vmatmul.mubr.f32.gmra.mxu0 %v371
        %v474 = vpop.f32.mrf.mxu0
        %v475 = vadd.f32 %v346, %v474
        %v476 = vpop.f32.mrf.mxu0
        %477 = vdwg.mxu0
        %v478 = vmax.f32 %v440, 0.0
        %v479 = vmax.f32 %v445, 0.0
        %v480 = vmax.f32 %v450, 0.0
        %v481 = vmax.f32 %v455, 0.0
        %v482 = vmax.f32 %v460, 0.0
        %v483 = vmax.f32 %v465, 0.0
        %v484 = vmax.f32 %v470, 0.0
        %v485 = vmax.f32 %v475, 0.0
        %v486 = vld [vmem:[%s4] sm:$0xff]
        %v487 = vld [vmem:[%s4 + $0x8] sm:$0xff]
        %v488 = vld [vmem:[%s4 + $0x10] sm:$0xff]
        %v489 = vld [vmem:[%s4 + $0x18] sm:$0xff]
        %v490 = vld [vmem:[%s5] sm:$0x1]
        %v492 = vlaneseq
        %v493 = vshrl.u32 %v492, 7
        %v494 = vsub.s32 0, %v493
        %v495 = vrot.slane %v490, %v494
        %vm497 = vcmask 261120
        %v499 = vsel %vm497, %v478, 0
        %v502 = vsel %vm497, %v479, 0
        %v505 = vsel %vm497, %v480, 0
        %v508 = vsel %vm497, %v481, 0
        %v511 = vsel %vm497, %v482, 0
        %v514 = vsel %vm497, %v483, 0
        %v517 = vsel %vm497, %v484, 0
        %v520 = vsel %vm497, %v485, 0
        %522 = vmatprep.subr.mxu0 0.0
        %523 = vmatpush1.msra.mxu0 0.0
        %524 = vmatprep.subr.mxu0 0.0
        %525 = vmatpush1.msra.mxu0 0.0
        %526 = vmatprep.subr.mxu0 0.0
        %527 = vmatpush1.msra.mxu0 0.0
        %528 = vmatprep.subr.mxu0 0.0
        %529 = vmatpush1.msra.mxu0 0.0
        %530 = vmatprep.subr.mxu0 0.0
        %531 = vmatpush1.msra.mxu0 0.0
        %532 = vmatprep.subr.mxu0 0.0
        %533 = vmatpush1.msra.mxu0 0.0
        %534 = vmatprep.subr.mxu0 0.0
        %535 = vmatpush1.msra.mxu0 0.0
        %536 = vmatprep.subr.mxu0 0.0
        %537 = vmatpush1.msra.mxu0 0.0
        %538 = vmatprep.subr.mxu0 0.0
        %539 = vmatpush1.msra.mxu0 0.0
        %540 = vmatprep.subr.mxu0 0.0
        %541 = vmatpush1.msra.mxu0 0.0
        %542 = vmatprep.subr.mxu0 0.0
        %543 = vmatpush1.msra.mxu0 0.0
        %544 = vmatprep.subr.mxu0 0.0
        %545 = vmatpush1.msra.mxu0 0.0
        %546 = vmatprep.subr.mxu0 0.0
        %547 = vmatpush1.msra.mxu0 %v489
        %548 = vmatprep.subr.mxu0 0.0
        %549 = vmatpush1.msra.mxu0 %v488
        %550 = vmatprep.subr.mxu0 0.0
        %551 = vmatpush1.msra.mxu0 %v487
        %552 = vmatprep.subr.mxu0 0.0
        %553 = vmatpush1.msra.mxu0 %v486
        %554 = vmatprep.subr.mxu0 0.0
        %555 = vmatpush2.msra.mxu0 0.0
        %556 = vmatprep.subr.mxu0 0.0
        %557 = vmatpush2.msra.mxu0 0.0
        %558 = vmatprep.subr.mxu0 0.0
        %559 = vmatpush2.msra.mxu0 0.0
        %560 = vmatprep.subr.mxu0 0.0
        %561 = vmatpush2.msra.mxu0 0.0
        %562 = vmatprep.subr.mxu0 0.0
        %563 = vmatpush2.msra.mxu0 0.0
        %564 = vmatprep.subr.mxu0 0.0
        %565 = vmatpush2.msra.mxu0 0.0
        %566 = vmatprep.subr.mxu0 0.0
        %567 = vmatpush2.msra.mxu0 0.0
        %568 = vmatprep.subr.mxu0 0.0
        %569 = vmatpush2.msra.mxu0 0.0
        %570 = vmatprep.subr.mxu0 0.0
        %571 = vmatpush2.msra.mxu0 0.0
        %572 = vmatprep.subr.mxu0 0.0
        %573 = vmatpush2.msra.mxu0 0.0
        %574 = vmatprep.subr.mxu0 0.0
        %575 = vmatpush2.msra.mxu0 0.0
        %576 = vmatprep.subr.mxu0 0.0
        %577 = vmatpush2.msra.mxu0 0.0
        %578 = vmatprep.subr.mxu0 0.0
        %579 = vmatpush2.msra.mxu0 0.0
        %580 = vmatprep.subr.mxu0 0.0
        %581 = vmatpush2.msra.mxu0 0.0
        %582 = vmatprep.subr.mxu0 0.0
        %583 = vmatpush2.msra.mxu0 0.0
        %584 = vmatprep.subr.mxu0 0.0
        %585 = vmatpush2.msra.mxu0 0.0
        %586 = vmatprep.mubr.f32.mxu0 0.0
        %587 = vmatmul.mubr.f32.gmra.mxu0 %v499
        %v588 = vpop.f32.mrf.mxu0
        %v589 = vadd.f32 %v495, %v588
        %v590 = vpop.f32.mrf.mxu0
        %591 = vmatprep.mubr.f32.mxu0 0.0
        %592 = vmatmul.mubr.f32.gmra.mxu0 %v502
        %v593 = vpop.f32.mrf.mxu0
        %v594 = vadd.f32 %v495, %v593
        %v595 = vpop.f32.mrf.mxu0
        %596 = vmatprep.mubr.f32.mxu0 0.0
        %597 = vmatmul.mubr.f32.gmra.mxu0 %v505
        %v598 = vpop.f32.mrf.mxu0
        %v599 = vadd.f32 %v495, %v598
        %v600 = vpop.f32.mrf.mxu0
        %601 = vmatprep.mubr.f32.mxu0 0.0
        %602 = vmatmul.mubr.f32.gmra.mxu0 %v508
        %v603 = vpop.f32.mrf.mxu0
        %v604 = vadd.f32 %v495, %v603
        %v605 = vpop.f32.mrf.mxu0
        %606 = vmatprep.mubr.f32.mxu0 0.0
        %607 = vmatmul.mubr.f32.gmra.mxu0 %v511
        %v608 = vpop.f32.mrf.mxu0
        %v609 = vadd.f32 %v495, %v608
        %v610 = vpop.f32.mrf.mxu0
        %611 = vmatprep.mubr.f32.mxu0 0.0
        %612 = vmatmul.mubr.f32.gmra.mxu0 %v514
        %v613 = vpop.f32.mrf.mxu0
        %v614 = vadd.f32 %v495, %v613
        %v615 = vpop.f32.mrf.mxu0
        %616 = vmatprep.mubr.f32.mxu0 0.0
        %617 = vmatmul.mubr.f32.gmra.mxu0 %v517
        %v618 = vpop.f32.mrf.mxu0
        %v619 = vadd.f32 %v495, %v618
        %v620 = vpop.f32.mrf.mxu0
        %621 = vmatprep.mubr.f32.mxu0 0.0
        %622 = vmatmul.mubr.f32.gmra.mxu0 %v520
        %v623 = vpop.f32.mrf.mxu0
        %v624 = vadd.f32 %v495, %v623
        %v625 = vpop.f32.mrf.mxu0
        %626 = vdwg.mxu0
        %vm627 = vcmask 31744
        %628 = vst.msk [vmem:[%s281] sm:$0xff] %vm627, %v589
        %629 = vst.msk [vmem:[%s281 + $0x8] sm:$0xff] %vm627, %v594
        %630 = vst.msk [vmem:[%s281 + $0x10] sm:$0xff] %vm627, %v599
        %631 = vst.msk [vmem:[%s281 + $0x18] sm:$0xff] %vm627, %v604
        %632 = vst.msk [vmem:[%s281 + $0x20] sm:$0xff] %vm627, %v609
        %633 = vst.msk [vmem:[%s281 + $0x28] sm:$0xff] %vm627, %v614
        %634 = vst.msk [vmem:[%s281 + $0x30] sm:$0xff] %vm627, %v619
        %635 = vst.msk [vmem:[%s281 + $0x38] sm:$0xff] %vm627, %v624
        %s636 = sand.u32 %s161, 1
        %s637 = sand.u32 %s161, 1
        %s638 = smul.addr %s637, 64
        %s639 = scalar_lea.vmem [#allocation2], %s638
        // Predicated region
        $region45: #{mlp_predictor_pallas.3} parent=43 // pred_check
          %p640 = pneg %p171
        $region46: #{mlp_predictor_pallas.3} parent=43 // pred_check_branch
          %642 = sbr.rel (%p640) target = $region48
        $region47: #{mlp_predictor_pallas.3} parent=43 // pred_region
          %s643 = smul.u32 8, %s17
          %s644 = ssub.s32 25, %s643
          %p645 = scmp.lt.s32.totalorder %s644, 8
          %s646 = scalar_select %p645, %s644, 8
          %s647 = smul.u32 128, %s646
          %p648 = scmp.ne.s32.totalorder 0, %s647
          %s649 = smul.addr %s643, 8
          %s650 = scalar_lea.vmem %s6, %s649
          // Predicated region
          $region49: #{mlp_predictor_pallas.3} parent=47 // pred_check
            %p651 = pneg %p648
          $region50: #{mlp_predictor_pallas.3} parent=47 // pred_check_branch
            %653 = sbr.rel (%p651) target = $region52
          $region51: #{mlp_predictor_pallas.3} parent=47 // pred_region
            // Predicated region
            $region53: #{mlp_predictor_pallas.3} parent=51 // pred_check
              _
            $region54: #{mlp_predictor_pallas.3} parent=51 // pred_check_branch
              %655 = sbr.rel (0) target = $region56
            $region55: #{mlp_predictor_pallas.3} parent=51 // pred_region
              // Predicated region
              $region75: #{mlp_predictor_pallas.3} parent=55 // pred_check
                _
              $region76: #{mlp_predictor_pallas.3} parent=55 // pred_check_branch
                %719 = sbr.rel (0) target = $region78
              $region77: #{mlp_predictor_pallas.3} parent=55 // pred_region
                %s720 = sshrl.u32 %s646, 3
                // While loop
                $region79: #{mlp_predictor_pallas.3} parent=77 // loop_pre_header
                  _
                $region80: #{mlp_predictor_pallas.3} parent=77 // loop_header
                  %s722 = sphi 0, %s724
                  %p723 = scmp.ge.s32.totalorder %s722, %s720
                  %s727 = sphi 0, %s748
                  %s728 = sphi %s639, %s751
                  %s729 = sphi %s650, %s752
                $region81: #{mlp_predictor_pallas.3} parent=77 // loop_header_branch
                  %726 = sbr.rel (%p723) target = $region85
                $region82: #{mlp_predictor_pallas.3} parent=77 // loop_body
                  %v730 = vld [vmem:[%s728] sm:$0xff]
                  %731 = vst [vmem:[%s729] sm:$0xff] %v730
                  %v732 = vld [vmem:[%s728 + $0x8] sm:$0xff]
                  %733 = vst [vmem:[%s729 + $0x8] sm:$0xff] %v732
                  %v734 = vld [vmem:[%s728 + $0x10] sm:$0xff]
                  %735 = vst [vmem:[%s729 + $0x10] sm:$0xff] %v734
                  %v736 = vld [vmem:[%s728 + $0x18] sm:$0xff]
                  %737 = vst [vmem:[%s729 + $0x18] sm:$0xff] %v736
                  %v738 = vld [vmem:[%s728 + $0x20] sm:$0xff]
                  %739 = vst [vmem:[%s729 + $0x20] sm:$0xff] %v738
                  %v740 = vld [vmem:[%s728 + $0x28] sm:$0xff]
                  %741 = vst [vmem:[%s729 + $0x28] sm:$0xff] %v740
                  %v742 = vld [vmem:[%s728 + $0x30] sm:$0xff]
                  %743 = vst [vmem:[%s729 + $0x30] sm:$0xff] %v742
                  %v744 = vld [vmem:[%s728 + $0x38] sm:$0xff]
                  %745 = vst [vmem:[%s729 + $0x38] sm:$0xff] %v744
                  %s746 = sadd.s32 1, %s727
                  %p747 = scmp.ge.s32.totalorder %s746, %s720
                  %s748 = scalar_select %p747, 0, %s746
                  %s749 = smul.u32 %s748, 64
                  %s750 = smul.u32 %s748, 64
                  %s751 = scalar_lea.vmem %s639, %s749 [#allocation2]
                  %s752 = scalar_lea.vmem %s650, %s750
                $region83: #{mlp_predictor_pallas.3} parent=77 // loop_footer
                  %s724 = sadd.s32 %s722, 1
                $region84: #{mlp_predictor_pallas.3} parent=77 // loop_footer_branch
                  %721 = sbr.rel target = $region80
                $region85: #{mlp_predictor_pallas.3} parent=77 // loop_exit
                  _
                %s753 = sshrl.u32 %s646, 3
                %s754 = sand.u32 %s646, 7
                %s755 = smul.u32 %s753, 8
                %s756 = smul.u32 8, %s755
                %s757 = scalar_lea.vmem %s639, %s756 [#allocation2]
                %s758 = smul.u32 8, %s755
                %s759 = scalar_lea.vmem %s650, %s758
                // While loop
                $region86: #{mlp_predictor_pallas.3} parent=77 // loop_pre_header
                  _
                $region87: #{mlp_predictor_pallas.3} parent=77 // loop_header
                  %s761 = sphi 0, %s763
                  %p762 = scmp.ge.s32.totalorder %s761, %s754
                  %s766 = sphi 0, %s773
                  %s767 = sphi %s757, %s776
                  %s768 = sphi %s759, %s777
                $region88: #{mlp_predictor_pallas.3} parent=77 // loop_header_branch
                  %765 = sbr.rel (%p762) target = $region92
                $region89: #{mlp_predictor_pallas.3} parent=77 // loop_body
                  %v769 = vld [vmem:[%s767] sm:$0xff]
                  %770 = vst [vmem:[%s768] sm:$0xff] %v769
                  %s771 = sadd.s32 1, %s766
                  %p772 = scmp.ge.s32.totalorder %s771, %s754
                  %s773 = scalar_select %p772, 0, %s771
                  %s774 = smul.u32 %s773, 8
                  %s775 = smul.u32 %s773, 8
                  %s776 = scalar_lea.vmem %s757, %s774 [#allocation2]
                  %s777 = scalar_lea.vmem %s759, %s775
                $region90: #{mlp_predictor_pallas.3} parent=77 // loop_footer
                  %s763 = sadd.s32 %s761, 1
                $region91: #{mlp_predictor_pallas.3} parent=77 // loop_footer_branch
                  %760 = sbr.rel target = $region87
                $region92: #{mlp_predictor_pallas.3} parent=77 // loop_exit
                  _
              $region78: #{mlp_predictor_pallas.3} parent=55 // pred_fallthru
                _
              // Predicated region
              $region93: #{mlp_predictor_pallas.3} parent=55 // pred_check
                _
              $region94: #{mlp_predictor_pallas.3} parent=55 // pred_check_branch
                %779 = sbr.rel target = $region96
              $region95: #{mlp_predictor_pallas.3} parent=55 // pred_region
                _
              $region96: #{mlp_predictor_pallas.3} parent=55 // pred_fallthru
                _
            $region56: #{mlp_predictor_pallas.3} parent=51 // pred_fallthru
              _
            // Predicated region
            $region57: #{mlp_predictor_pallas.3} parent=51 // pred_check
              _
            $region58: #{mlp_predictor_pallas.3} parent=51 // pred_check_branch
              %657 = sbr.rel target = $region60
            $region59: #{mlp_predictor_pallas.3} parent=51 // pred_region
              %s659 = ssub.s32 256, 1
              %s660 = sshrl.u32 %s646, 3
              // While loop
              $region61: #{mlp_predictor_pallas.3} parent=59 // loop_pre_header
                _
              $region62: #{mlp_predictor_pallas.3} parent=59 // loop_header
                %s662 = sphi 0, %s664
                %p663 = scmp.ge.s32.totalorder %s662, %s660
                %s667 = sphi 0, %s688
                %s668 = sphi %s639, %s691
                %s669 = sphi %s650, %s692
              $region63: #{mlp_predictor_pallas.3} parent=59 // loop_header_branch
                %666 = sbr.rel (%p663) target = $region67
              $region64: #{mlp_predictor_pallas.3} parent=59 // loop_body
                %v670 = vld [vmem:[%s668] sm:%s659]
                %671 = vst [vmem:[%s669] sm:%s659] %v670
                %v672 = vld [vmem:[%s668 + $0x8] sm:%s659]
                %673 = vst [vmem:[%s669 + $0x8] sm:%s659] %v672
                %v674 = vld [vmem:[%s668 + $0x10] sm:%s659]
                %675 = vst [vmem:[%s669 + $0x10] sm:%s659] %v674
                %v676 = vld [vmem:[%s668 + $0x18] sm:%s659]
                %677 = vst [vmem:[%s669 + $0x18] sm:%s659] %v676
                %v678 = vld [vmem:[%s668 + $0x20] sm:%s659]
                %679 = vst [vmem:[%s669 + $0x20] sm:%s659] %v678
                %v680 = vld [vmem:[%s668 + $0x28] sm:%s659]
                %681 = vst [vmem:[%s669 + $0x28] sm:%s659] %v680
                %v682 = vld [vmem:[%s668 + $0x30] sm:%s659]
                %683 = vst [vmem:[%s669 + $0x30] sm:%s659] %v682
                %v684 = vld [vmem:[%s668 + $0x38] sm:%s659]
                %685 = vst [vmem:[%s669 + $0x38] sm:%s659] %v684
                %s686 = sadd.s32 1, %s667
                %p687 = scmp.ge.s32.totalorder %s686, %s660
                %s688 = scalar_select %p687, 0, %s686
                %s689 = smul.u32 %s688, 64
                %s690 = smul.u32 %s688, 64
                %s691 = scalar_lea.vmem %s639, %s689 [#allocation2]
                %s692 = scalar_lea.vmem %s650, %s690
              $region65: #{mlp_predictor_pallas.3} parent=59 // loop_footer
                %s664 = sadd.s32 %s662, 1
              $region66: #{mlp_predictor_pallas.3} parent=59 // loop_footer_branch
                %661 = sbr.rel target = $region62
              $region67: #{mlp_predictor_pallas.3} parent=59 // loop_exit
                _
              %s693 = sshrl.u32 %s646, 3
              %s694 = sand.u32 %s646, 7
              %s695 = smul.u32 %s693, 8
              %s696 = smul.u32 8, %s695
              %s697 = scalar_lea.vmem %s639, %s696 [#allocation2]
              %s698 = smul.u32 8, %s695
              %s699 = scalar_lea.vmem %s650, %s698
              // While loop
              $region68: #{mlp_predictor_pallas.3} parent=59 // loop_pre_header
                _
              $region69: #{mlp_predictor_pallas.3} parent=59 // loop_header
                %s701 = sphi 0, %s703
                %p702 = scmp.ge.s32.totalorder %s701, %s694
                %s706 = sphi 0, %s713
                %s707 = sphi %s697, %s716
                %s708 = sphi %s699, %s717
              $region70: #{mlp_predictor_pallas.3} parent=59 // loop_header_branch
                %705 = sbr.rel (%p702) target = $region74
              $region71: #{mlp_predictor_pallas.3} parent=59 // loop_body
                %v709 = vld [vmem:[%s707] sm:%s659]
                %710 = vst [vmem:[%s708] sm:%s659] %v709
                %s711 = sadd.s32 1, %s706
                %p712 = scmp.ge.s32.totalorder %s711, %s694
                %s713 = scalar_select %p712, 0, %s711
                %s714 = smul.u32 %s713, 8
                %s715 = smul.u32 %s713, 8
                %s716 = scalar_lea.vmem %s697, %s714 [#allocation2]
                %s717 = scalar_lea.vmem %s699, %s715
              $region72: #{mlp_predictor_pallas.3} parent=59 // loop_footer
                %s703 = sadd.s32 %s701, 1
              $region73: #{mlp_predictor_pallas.3} parent=59 // loop_footer_branch
                %700 = sbr.rel target = $region69
              $region74: #{mlp_predictor_pallas.3} parent=59 // loop_exit
                _
            $region60: #{mlp_predictor_pallas.3} parent=51 // pred_fallthru
              _
          $region52: #{mlp_predictor_pallas.3} parent=47 // pred_fallthru
            _
          %780 = vnop
        $region48: #{mlp_predictor_pallas.3} parent=43 // pred_fallthru
          _
      $region44: #{mlp_predictor_pallas.3} parent=5 // pred_fallthru
        _
      %p781 = scmp.le.s32.totalorder 2, %s12
      // Predicated region
      $region97: #{mlp_predictor_pallas.3} parent=5 // pred_check
        %p782 = pneg %p781
      $region98: #{mlp_predictor_pallas.3} parent=5 // pred_check_branch
        %784 = sbr.rel (%p782) target = $region100
      $region99: #{mlp_predictor_pallas.3} parent=5 // pred_region
        %s785 = ssub.s32 %s12, 2
        // Predicated region
        $region101: #{mlp_predictor_pallas.3} parent=99 // pred_check
          %p786 = pneg %p177
        $region102: #{mlp_predictor_pallas.3} parent=99 // pred_check_branch
          %788 = sbr.rel (%p786) target = $region104
        $region103: #{mlp_predictor_pallas.3} parent=99 // pred_region
          %s789 = sand.u32 %s162, 1
          %s790 = sand.u32 %s162, 1
          %s791 = smul.addr %s790, 64
          %s792 = scalar_lea.vmem [#allocation2], %s791
        $region104: #{mlp_predictor_pallas.3} parent=99 // pred_fallthru
          _
      $region100: #{mlp_predictor_pallas.3} parent=5 // pred_fallthru
        _
    $region6: #{mlp_predictor_pallas.3} parent=1 // loop_footer
      %s16 = sadd.s32 1, %s12
    $region7: #{mlp_predictor_pallas.3} parent=1 // loop_footer_branch
      %11 = sbr.rel target = $region3
    $region8: #{mlp_predictor_pallas.3} parent=1 // loop_exit
      _

</llo_original>
